<compile_context>
chip_gen: v7x
topology: tpu7x:2x2x1
jax: 0.10.0
libtpu: 0.0.40
codegen_flags: <defaults>
</compile_context>

<pallas_src>
import functools
import math

import jax
import jax.numpy as jnp
from jax import lax
from jax.experimental import pallas as pl
from jax.experimental.pallas import tpu as pltpu

# ----------------------------- configuration -------------------------------
B = 4            # batch size
C_IN = 4         # input channels
H = W = 16       # spatial size
C_HID = 32       # encoder hidden channels
NUM_CLASSES = 8  # args.num_classes
LOW_DIM = 16     # args.low_dim
MOCO_QUEUE = 8   # args.moco_queue (must be divisible by batch size)
PROTO_M = 0.99   # args.proto_m
MOCO_M = 0.999   # args.moco_m

K_RAW = 9 * C_IN          # im2col contraction dim (36)
K_PAD = 128               # pad K to a full lane width (aligned MXU feed)
N_ROWS = B * H * W        # im2col rows per image batch

PARAM_NAMES = ("conv_w", "conv_b", "cls_w", "cls_b", "proj_w", "proj_b")

VMEM = pl.BlockSpec(memory_space=pltpu.MemorySpace.VMEM)


# ------------------------------ Pallas kernels ------------------------------
def _encoder_kernel(p_ref, w_ref, b_ref, wc_ref, bc_ref, wp_ref, bp_ref,
                    logits_ref, q_ref, *, batch, hw):
    """Fused encoder: im2col conv matmul + ReLU + global-avg-pool + classifier
    head + L2-normalized projection head.  One grid step per encoder
    (step 0 = encoder_q, step 1 = encoder_k); feat never leaves VMEM."""
    feat = jnp.maximum(
        jnp.dot(p_ref[...], w_ref[...], preferred_element_type=jnp.float32)
        + b_ref[...], 0.0)                                   # (B*HW, C_HID)
    # global average pool: sublane-reduce over HW, scaled once.
    pooled = jnp.sum(feat.reshape(batch, hw, feat.shape[-1]),
                     axis=1) * (1.0 / hw)                    # (B, C_HID)
    logits_ref[...] = (
        jnp.dot(pooled, wc_ref[...], preferred_element_type=jnp.float32)
        + bc_ref[...])
    proj = (jnp.dot(pooled, wp_ref[...], preferred_element_type=jnp.float32)
            + bp_ref[...])
    # proj / max(||proj||, 1e-12)  ==  proj * rsqrt(max(||proj||^2, 1e-24))
    inv = lax.rsqrt(jnp.maximum(jnp.sum(proj * proj, axis=1, keepdims=True),
                                1e-24))
    q_ref[...] = proj * inv


def _pico_fused_kernel(logits_ref, py_ref, q_ref, pin_ref,
                       scores_ref, sprot_ref, pout_ref, *,
                       proto_m, batch, num_classes):
    """softmax(output)*partial_Y, pseudo labels, q @ prototypes^T softmax,
    and the sequential per-sample prototype momentum update + row L2 norm —
    all in one kernel (no HBM round-trip of pseudo_labels / q between calls)."""
    logits = logits_ref[...]
    m = jnp.max(logits, axis=1, keepdims=True)
    e = jnp.exp(logits - m)
    sm = e * pl.reciprocal(jnp.sum(e, axis=1, keepdims=True), approx=True)
    scores = sm * py_ref[...]
    scores_ref[...] = scores

    q = q_ref[...]
    protos_in = pin_ref[...]

    # prototype logits: contract on the shared last dim (no wrapper-side .T);
    # uses the PRE-update prototypes, exactly as in PiCO.
    lp = lax.dot_general(q, protos_in, (((1,), (1,)), ((), ())),
                         preferred_element_type=jnp.float32)   # (B, NC)
    m2 = jnp.max(lp, axis=1, keepdims=True)
    e2 = jnp.exp(lp - m2)
    sprot_ref[...] = e2 * pl.reciprocal(jnp.sum(e2, axis=1, keepdims=True),
                                        approx=True)

    # pseudo labels (first-index argmax over scores, matching torch.max ties)
    mx = jnp.max(scores, axis=1, keepdims=True)
    col = lax.broadcasted_iota(jnp.int32, scores.shape, 1)
    lbl = jnp.min(jnp.where(scores == mx, col, num_classes), axis=1,
                  keepdims=True)                               # (B, 1) int32

    # sequential per-sample prototype momentum update, fully unrolled (B static);
    # duplicates of a label compound sequentially, as in the PyTorch loop.
    one_minus = 1.0 - proto_m
    rows = lax.broadcasted_iota(jnp.int32, (num_classes, 1), 0)  # hoisted
    protos = protos_in
    for i in range(batch):
        lb = lbl[i:i + 1, :]                                   # (1, 1)
        feat = q[i:i + 1, :]                                   # (1, LOW_DIM)
        upd = protos * proto_m + one_minus * feat
        protos = jnp.where(rows == lb, upd, protos)

    inv = lax.rsqrt(jnp.maximum(jnp.sum(protos * protos, axis=1, keepdims=True),
                                1e-24))
    pout_ref[...] = protos * inv


def _momentum_kernel(pk_ref, pq_ref, o_ref, *, m):
    """param_k = param_k * m + param_q * (1 - m) on a packed (rows, 128) buffer."""
    o_ref[...] = pk_ref[...] * m + pq_ref[...] * (1.0 - m)


# ------------------------------ encoder glue --------------------------------
def build_patches(img_nchw):
    """NCHW image -> im2col patch matrix (B*H*W, K_PAD) with zero-padded K."""
    x = jnp.transpose(img_nchw, (0, 2, 3, 1))                 # NCHW -> NHWC
    Bn, Hn, Wn, Cn = x.shape
    xp = jnp.pad(x, ((0, 0), (1, 1), (1, 1), (0, 0)))
    pats = [xp[:, dy:dy + Hn, dx:dx + Wn, :] for dy in range(3) for dx in range(3)]
    patches = jnp.concatenate(pats, axis=-1).reshape(Bn * Hn * Wn, 9 * Cn)
    return jnp.pad(patches, ((0, 0), (0, K_PAD - 9 * Cn)))


def _stacked_spec(d0, d1):
    # leading (encoder) axis squeezed, indexed by the grid step
    return pl.BlockSpec((None, d0, d1), lambda i: (i, 0, 0))


def dual_encoder_forward(stacked, patches):
    """One pallas_call runs encoder_q (grid step 0) and encoder_k (grid step 1);
    'parallel' semantics lets v7x put the two steps on its two TensorCores."""
    grid_spec = pltpu.PrefetchScalarGridSpec(
        num_scalar_prefetch=0,
        grid=(2,),
        in_specs=[
            _stacked_spec(N_ROWS, K_PAD),          # patches
            _stacked_spec(K_PAD, C_HID),           # conv_w
            _stacked_spec(1, C_HID),               # conv_b
            _stacked_spec(C_HID, NUM_CLASSES),     # cls_w
            _stacked_spec(1, NUM_CLASSES),         # cls_b
            _stacked_spec(C_HID, LOW_DIM),         # proj_w
            _stacked_spec(1, LOW_DIM),             # proj_b
        ],
        out_specs=(
            _stacked_spec(B, NUM_CLASSES),         # logits
            _stacked_spec(B, LOW_DIM),             # normalized projection
        ),
    )
    logits2, q2 = pl.pallas_call(
        functools.partial(_encoder_kernel, batch=B, hw=H * W),
        out_shape=(jax.ShapeDtypeStruct((2, B, NUM_CLASSES), jnp.float32),
                   jax.ShapeDtypeStruct((2, B, LOW_DIM), jnp.float32)),
        grid_spec=grid_spec,
        compiler_params=pltpu.CompilerParams(
            dimension_semantics=("parallel",)),
    )(patches, stacked["conv_w"], stacked["conv_b"], stacked["cls_w"],
      stacked["cls_b"], stacked["proj_w"], stacked["proj_b"])
    return logits2, q2


def momentum_update(params_k, params_q, m):
    """Single-launch momentum update: pack all params into one lane-dense
    (rows, 128) buffer, run one kernel, unpack."""
    shapes = [params_k[n].shape for n in PARAM_NAMES]
    sizes = [math.prod(s) for s in shapes]
    flat_k = jnp.concatenate([params_k[n].reshape(-1) for n in PARAM_NAMES])
    flat_q = jnp.concatenate([params_q[n].reshape(-1) for n in PARAM_NAMES])
    total = flat_k.shape[0]
    padded = ((total + 1023) // 1024) * 1024       # multiple of 8*128
    fk = jnp.pad(flat_k, (0, padded - total)).reshape(padded // 128, 128)
    fq = jnp.pad(flat_q, (0, padded - total)).reshape(padded // 128, 128)
    out = pl.pallas_call(
        functools.partial(_momentum_kernel, m=m),
        out_shape=jax.ShapeDtypeStruct(fk.shape, jnp.float32),
        in_specs=[VMEM, VMEM],
        out_specs=VMEM,
    )(fk, fq).reshape(-1)
    new, off = {}, 0
    for n, s, sz in zip(PARAM_NAMES, shapes, sizes):
        new[n] = out[off:off + sz].reshape(s)
        off += sz
    return new


# ------------------------------ PiCO forward --------------------------------
def pico_forward(state, params_q, params_k, img_q, im_k, partial_Y, shuffle_key):
    # momentum update of key encoder (params_q are unchanged by the forward,
    # so running it before the fused dual-encoder call matches PiCO semantics:
    # encoder_q uses the original params_q, encoder_k the updated params_k)
    params_k = momentum_update(params_k, params_q, MOCO_M)

    # batch shuffle / unshuffle (single device => permutation + inverse;
    # synthetic encoder has no BatchNorm so this is semantically a no-op)
    # TODO(synk): concat_all_gather / DDP broadcast are identity here (single device).
    idx_shuffle = jax.random.permutation(shuffle_key, B)
    idx_unshuffle = jnp.argsort(idx_shuffle)
    im_k_shuf = im_k[idx_shuffle]

    # one fused pallas_call for both encoder passes
    patches = jnp.stack([build_patches(img_q), build_patches(im_k_shuf)])
    stacked = {n: jnp.stack([params_q[n], params_k[n]]) for n in PARAM_NAMES}
    logits2, q2 = dual_encoder_forward(stacked, patches)
    output = logits2[0]
    q = q2[0]
    k = q2[1][idx_unshuffle]
    # scores / partial_Y shuffle + unshuffle restores the original order.

    # fused: softmax*partial_Y, pseudo labels, prototype logits + softmax,
    # prototype momentum update + renormalization (prototypes read pre-update
    # for score_prot, exactly as in PiCO)
    scores, score_prot, new_prototypes = pl.pallas_call(
        functools.partial(_pico_fused_kernel, proto_m=PROTO_M, batch=B,
                          num_classes=NUM_CLASSES),
        out_shape=(jax.ShapeDtypeStruct((B, NUM_CLASSES), jnp.float32),
                   jax.ShapeDtypeStruct((B, NUM_CLASSES), jnp.float32),
                   jax.ShapeDtypeStruct((NUM_CLASSES, LOW_DIM), jnp.float32)),
        in_specs=[VMEM, VMEM, VMEM, VMEM],
        out_specs=(VMEM, VMEM, VMEM),
    )(output, partial_Y, q, state["prototypes"])

    # concatenations with the (pre-enqueue) queue buffers
    features = jnp.concatenate([q, k, state["queue"]], axis=0)
    pseudo_scores = jnp.concatenate([scores, scores, state["queue_pseudo"]], axis=0)
    partial_target = jnp.concatenate([partial_Y, partial_Y, state["queue_partial"]], axis=0)

    # dequeue and enqueue (buffer state update, glue)
    ptr = state["queue_ptr"]
    zero = jnp.int32(0)
    new_state = dict(state)
    new_state["queue"] = lax.dynamic_update_slice(state["queue"], k, (ptr, zero))
    new_state["queue_pseudo"] = lax.dynamic_update_slice(
        state["queue_pseudo"], scores, (ptr, zero))
    new_state["queue_partial"] = lax.dynamic_update_slice(
        state["queue_partial"], partial_Y, (ptr, zero))
    new_state["queue_ptr"] = (ptr + B) % MOCO_QUEUE
    new_state["prototypes"] = new_prototypes

    return (output, features, pseudo_scores, partial_target, score_prot), new_state, params_k


# ------------------------------ parameter / state init ----------------------
def init_params(key):
    ks = jax.random.split(key, 6)
    conv_w = 0.1 * jax.random.normal(ks[0], (3, 3, C_IN, C_HID), jnp.float32)
    # store conv weight pre-flattened and K-padded (zero rows) for the im2col matmul;
    # the momentum update keeps the zero padding zero, so this is lossless.
    conv_w = jnp.pad(conv_w.reshape(K_RAW, C_HID), ((0, K_PAD - K_RAW), (0, 0)))
    return {
        "conv_w": conv_w,                                                # (K_PAD, C_HID)
        "conv_b": 0.01 * jax.random.normal(ks[1], (1, C_HID), jnp.float32),
        "cls_w": 0.1 * jax.random.normal(ks[2], (C_HID, NUM_CLASSES), jnp.float32),
        "cls_b": 0.01 * jax.random.normal(ks[3], (1, NUM_CLASSES), jnp.float32),
        "proj_w": 0.1 * jax.random.normal(ks[4], (C_HID, LOW_DIM), jnp.float32),
        "proj_b": 0.01 * jax.random.normal(ks[5], (1, LOW_DIM), jnp.float32),
    }


def init_state(key):
    kq, kp, kpt = jax.random.split(key, 3)
    queue = jax.random.normal(kq, (MOCO_QUEUE, LOW_DIM), jnp.float32)
    # F.normalize(queue, dim=0): normalize along the queue (column) dimension.
    queue = queue / jnp.maximum(
        jnp.sqrt(jnp.sum(queue * queue, axis=0, keepdims=True)), 1e-12)
    return {
        "queue": queue,
        "queue_pseudo": jax.random.normal(kp, (MOCO_QUEUE, NUM_CLASSES), jnp.float32),
        "queue_partial": jax.random.normal(kpt, (MOCO_QUEUE, NUM_CLASSES), jnp.float32),
        "queue_ptr": jnp.array(0, jnp.int32),
        "prototypes": jnp.zeros((NUM_CLASSES, LOW_DIM), jnp.float32),
    }


# ------------------------------ main -----------------------------------------
if __name__ == "__main__":
    assert MOCO_QUEUE % B == 0, "moco_queue must be divisible by batch size"

    root = jax.random.PRNGKey(0)
    k_params, k_state, k_imgq, k_imgk, k_py, k_lbl, k_shuf = jax.random.split(root, 7)

    params_q = init_params(k_params)
    # encoder_k is initialized as a copy of encoder_q (param_k.copy_(param_q))
    params_k = {name: v for name, v in params_q.items()}
    state = init_state(k_state)

    img_q = jax.random.normal(k_imgq, (B, C_IN, H, W), jnp.float32)   # NCHW
    im_k = jax.random.normal(k_imgk, (B, C_IN, H, W), jnp.float32)    # NCHW
    partial_Y = (jax.random.uniform(k_py, (B, NUM_CLASSES)) < 0.4).astype(jnp.float32)
    true_lbl = jax.random.randint(k_lbl, (B,), 0, NUM_CLASSES)
    partial_Y = partial_Y.at[jnp.arange(B), true_lbl].set(1.0)

    fwd = jax.jit(pico_forward)
    (output, features, pseudo_scores, partial_target, score_prot), new_state, params_k = (
        fwd(state, params_q, params_k, img_q, im_k, partial_Y, k_shuf))

    jax.block_until_ready((output, features, pseudo_scores, partial_target,
                           score_prot, new_state["prototypes"], new_state["queue"]))

    assert output.shape == (B, NUM_CLASSES)
    assert features.shape == (2 * B + MOCO_QUEUE, LOW_DIM)
    assert pseudo_scores.shape == (2 * B + MOCO_QUEUE, NUM_CLASSES)
    assert partial_target.shape == (2 * B + MOCO_QUEUE, NUM_CLASSES)
    assert score_prot.shape == (B, NUM_CLASSES)
    assert bool(jnp.all(jnp.isfinite(features))) and bool(jnp.all(jnp.isfinite(score_prot)))

    print("KERNEL_OK")
</pallas_src>

<mosaic_0001>
module attributes {stable_mosaic.version = 11 : i64} {
  func.func @_momentum_kernel(%arg0: memref<40x128xf32, #tpu.memory_space<vmem>>, %arg1: memref<40x128xf32, #tpu.memory_space<vmem>>, %arg2: memref<40x128xf32, #tpu.memory_space<vmem>>) attributes {dimension_semantics = [], scalar_prefetch = 0 : i64, scratch_operands = 0 : i64, tpu.core_type = #tpu.core_type<tc>} {
    %c0 = arith.constant 0 : index
    %c0_0 = arith.constant 0 : index
    %0 = vector.load %arg0[%c0, %c0_0] : memref<40x128xf32, #tpu.memory_space<vmem>>, vector<40x128xf32>
    %cst = arith.constant 9.990000e-01 : f32
    %1 = vector.broadcast %cst : f32 to vector<40x128xf32>
    %2 = arith.mulf %0, %1 : vector<40x128xf32>
    %c0_1 = arith.constant 0 : index
    %c0_2 = arith.constant 0 : index
    %3 = vector.load %arg1[%c0_1, %c0_2] : memref<40x128xf32, #tpu.memory_space<vmem>>, vector<40x128xf32>
    %cst_3 = arith.constant 1.000000e-03 : f32
    %4 = vector.broadcast %cst_3 : f32 to vector<40x128xf32>
    %5 = arith.mulf %3, %4 : vector<40x128xf32>
    %6 = arith.addf %2, %5 : vector<40x128xf32>
    %c0_4 = arith.constant 0 : index
    %c0_5 = arith.constant 0 : index
    %7 = vector.load %arg2[%c0_4, %c0_5] : memref<40x128xf32, #tpu.memory_space<vmem>>, vector<40x128xf32>
    tpu.vector_store %arg2[%c0_4, %c0_5], %6 {strides = array<i32>} : memref<40x128xf32, #tpu.memory_space<vmem>>, vector<40x128xf32>,
    return
  }
}

module attributes {stable_mosaic.version = 11 : i64} {
  func.func @_pico_fused_kernel(%arg0: memref<4x8xf32, #tpu.memory_space<vmem>>, %arg1: memref<4x8xf32, #tpu.memory_space<vmem>>, %arg2: memref<4x16xf32, #tpu.memory_space<vmem>>, %arg3: memref<8x16xf32, #tpu.memory_space<vmem>>, %arg4: memref<4x8xf32, #tpu.memory_space<vmem>>, %arg5: memref<4x8xf32, #tpu.memory_space<vmem>>, %arg6: memref<8x16xf32, #tpu.memory_space<vmem>>) attributes {dimension_semantics = [], scalar_prefetch = 0 : i64, scratch_operands = 0 : i64, tpu.core_type = #tpu.core_type<tc>} {
    %c0 = arith.constant 0 : index
    %c0_0 = arith.constant 0 : index
    %0 = vector.load %arg0[%c0, %c0_0] : memref<4x8xf32, #tpu.memory_space<vmem>>, vector<4x8xf32>
    %cst = arith.constant dense<0xFF800000> : vector<4xf32>
    %1 = vector.multi_reduction <maximumf>, %0, %cst [1] : vector<4x8xf32> to vector<4xf32>
    %2 = vector.shape_cast %1 : vector<4xf32> to vector<4x1xf32>
    %3 = vector.broadcast %2 : vector<4x1xf32> to vector<4x8xf32>
    %4 = arith.subf %0, %3 : vector<4x8xf32>
    %5 = math.exp %4 : vector<4x8xf32>
    %cst_1 = arith.constant dense<0.000000e+00> : vector<4xf32>
    %6 = vector.multi_reduction <add>, %5, %cst_1 [1] : vector<4x8xf32> to vector<4xf32>
    %7 = vector.shape_cast %6 : vector<4xf32> to vector<4x1xf32>
    %8 = tpu.reciprocal %7 {approx = true} : vector<4x1xf32> -> vector<4x1xf32>
    %9 = vector.broadcast %8 : vector<4x1xf32> to vector<4x8xf32>
    %10 = arith.mulf %5, %9 : vector<4x8xf32>
    %c0_2 = arith.constant 0 : index
    %c0_3 = arith.constant 0 : index
    %11 = vector.load %arg1[%c0_2, %c0_3] : memref<4x8xf32, #tpu.memory_space<vmem>>, vector<4x8xf32>
    %12 = arith.mulf %10, %11 : vector<4x8xf32>
    %c0_4 = arith.constant 0 : index
    %c0_5 = arith.constant 0 : index
    %13 = vector.load %arg4[%c0_4, %c0_5] : memref<4x8xf32, #tpu.memory_space<vmem>>, vector<4x8xf32>
    tpu.vector_store %arg4[%c0_4, %c0_5], %12 {strides = array<i32>} : memref<4x8xf32, #tpu.memory_space<vmem>>, vector<4x8xf32>,
    %c0_6 = arith.constant 0 : index
    %c0_7 = arith.constant 0 : index
    %14 = vector.load %arg2[%c0_6, %c0_7] : memref<4x16xf32, #tpu.memory_space<vmem>>, vector<4x16xf32>
    %c0_8 = arith.constant 0 : index
    %c0_9 = arith.constant 0 : index
    %15 = vector.load %arg3[%c0_8, %c0_9] : memref<8x16xf32, #tpu.memory_space<vmem>>, vector<8x16xf32>
    %cst_10 = arith.constant dense<0.000000e+00> : vector<4x8xf32>
    %16 = tpu.matmul %14, %15, %cst_10 {dimension_numbers = #tpu.dot_dimension_numbers<[1], [1], [0], [0], [0, 0, 1, 0], [], []>} : vector<4x16xf32>, vector<8x16xf32>, vector<4x8xf32> -> vector<4x8xf32>
    %cst_11 = arith.constant dense<0xFF800000> : vector<4xf32>
    %17 = vector.multi_reduction <maximumf>, %16, %cst_11 [1] : vector<4x8xf32> to vector<4xf32>
    %18 = vector.shape_cast %17 : vector<4xf32> to vector<4x1xf32>
    %19 = vector.broadcast %18 : vector<4x1xf32> to vector<4x8xf32>
    %20 = arith.subf %16, %19 : vector<4x8xf32>
    %21 = math.exp %20 : vector<4x8xf32>
    %cst_12 = arith.constant dense<0.000000e+00> : vector<4xf32>
    %22 = vector.multi_reduction <add>, %21, %cst_12 [1] : vector<4x8xf32> to vector<4xf32>
    %23 = vector.shape_cast %22 : vector<4xf32> to vector<4x1xf32>
    %24 = tpu.reciprocal %23 {approx = true} : vector<4x1xf32> -> vector<4x1xf32>
    %25 = vector.broadcast %24 : vector<4x1xf32> to vector<4x8xf32>
    %26 = arith.mulf %21, %25 : vector<4x8xf32>
    %c0_13 = arith.constant 0 : index
    %c0_14 = arith.constant 0 : index
    %27 = vector.load %arg5[%c0_13, %c0_14] : memref<4x8xf32, #tpu.memory_space<vmem>>, vector<4x8xf32>
    tpu.vector_store %arg5[%c0_13, %c0_14], %26 {strides = array<i32>} : memref<4x8xf32, #tpu.memory_space<vmem>>, vector<4x8xf32>,
    %cst_15 = arith.constant dense<0xFF800000> : vector<4xf32>
    %28 = vector.multi_reduction <maximumf>, %12, %cst_15 [1] : vector<4x8xf32> to vector<4xf32>
    %29 = vector.shape_cast %28 : vector<4xf32> to vector<4x1xf32>
    %30 = tpu.iota {dimensions = array<i32: 1>} : vector<4x8xi32>
    %31 = vector.broadcast %29 : vector<4x1xf32> to vector<4x8xf32>
    %32 = arith.cmpf oeq, %12, %31 : vector<4x8xf32>
    %c8_i32 = arith.constant 8 : i32
    %33 = vector.broadcast %c8_i32 : i32 to vector<4x8xi32>
    %34 = arith.select %32, %30, %33 : vector<4x8xi1>, vector<4x8xi32>
    %cst_16 = arith.constant dense<2147483647> : vector<4xi32>
    %35 = vector.multi_reduction <minsi>, %34, %cst_16 [1] : vector<4x8xi32> to vector<4xi32>
    %36 = vector.shape_cast %35 : vector<4xi32> to vector<4x1xi32>
    %37 = tpu.iota {dimensions = array<i32: 0>} : vector<8x1xi32>
    %38 = vector.extract_strided_slice %36 {offsets = [0, 0], sizes = [1, 1], strides = [1, 1]} : vector<4x1xi32> to vector<1x1xi32>
    %39 = vector.extract_strided_slice %14 {offsets = [0, 0], sizes = [1, 16], strides = [1, 1]} : vector<4x16xf32> to vector<1x16xf32>
    %cst_17 = arith.constant 9.900000e-01 : f32
    %40 = vector.broadcast %cst_17 : f32 to vector<8x16xf32>
    %41 = arith.mulf %15, %40 : vector<8x16xf32>
    %cst_18 = arith.constant 0.00999999977 : f32
    %42 = vector.broadcast %cst_18 : f32 to vector<1x16xf32>
    %43 = arith.mulf %42, %39 : vector<1x16xf32>
    %44 = vector.broadcast %43 : vector<1x16xf32> to vector<8x16xf32>
    %45 = arith.addf %41, %44 : vector<8x16xf32>
    %46 = vector.broadcast %38 : vector<1x1xi32> to vector<8x1xi32>
    %47 = arith.cmpi eq, %37, %46 : vector<8x1xi32>
    %48 = vector.shape_cast %47 : vector<8x1xi1> to vector<8x1xi1>
    %49 = vector.broadcast %48 : vector<8x1xi1> to vector<8x16xi1>
    %50 = arith.select %49, %45, %15 : vector<8x16xi1>, vector<8x16xf32>
    %51 = vector.extract_strided_slice %36 {offsets = [1, 0], sizes = [1, 1], strides = [1, 1]} : vector<4x1xi32> to vector<1x1xi32>
    %52 = vector.extract_strided_slice %14 {offsets = [1, 0], sizes = [1, 16], strides = [1, 1]} : vector<4x16xf32> to vector<1x16xf32>
    %cst_19 = arith.constant 9.900000e-01 : f32
    %53 = vector.broadcast %cst_19 : f32 to vector<8x16xf32>
    %54 = arith.mulf %50, %53 : vector<8x16xf32>
    %cst_20 = arith.constant 0.00999999977 : f32
    %55 = vector.broadcast %cst_20 : f32 to vector<1x16xf32>
    %56 = arith.mulf %55, %52 : vector<1x16xf32>
    %57 = vector.broadcast %56 : vector<1x16xf32> to vector<8x16xf32>
    %58 = arith.addf %54, %57 : vector<8x16xf32>
    %59 = vector.broadcast %51 : vector<1x1xi32> to vector<8x1xi32>
    %60 = arith.cmpi eq, %37, %59 : vector<8x1xi32>
    %61 = vector.shape_cast %60 : vector<8x1xi1> to vector<8x1xi1>
    %62 = vector.broadcast %61 : vector<8x1xi1> to vector<8x16xi1>
    %63 = arith.select %62, %58, %50 : vector<8x16xi1>, vector<8x16xf32>
    %64 = vector.extract_strided_slice %36 {offsets = [2, 0], sizes = [1, 1], strides = [1, 1]} : vector<4x1xi32> to vector<1x1xi32>
    %65 = vector.extract_strided_slice %14 {offsets = [2, 0], sizes = [1, 16], strides = [1, 1]} : vector<4x16xf32> to vector<1x16xf32>
    %cst_21 = arith.constant 9.900000e-01 : f32
    %66 = vector.broadcast %cst_21 : f32 to vector<8x16xf32>
    %67 = arith.mulf %63, %66 : vector<8x16xf32>
    %cst_22 = arith.constant 0.00999999977 : f32
    %68 = vector.broadcast %cst_22 : f32 to vector<1x16xf32>
    %69 = arith.mulf %68, %65 : vector<1x16xf32>
    %70 = vector.broadcast %69 : vector<1x16xf32> to vector<8x16xf32>
    %71 = arith.addf %67, %70 : vector<8x16xf32>
    %72 = vector.broadcast %64 : vector<1x1xi32> to vector<8x1xi32>
    %73 = arith.cmpi eq, %37, %72 : vector<8x1xi32>
    %74 = vector.shape_cast %73 : vector<8x1xi1> to vector<8x1xi1>
    %75 = vector.broadcast %74 : vector<8x1xi1> to vector<8x16xi1>
    %76 = arith.select %75, %71, %63 : vector<8x16xi1>, vector<8x16xf32>
    %77 = vector.extract_strided_slice %36 {offsets = [3, 0], sizes = [1, 1], strides = [1, 1]} : vector<4x1xi32> to vector<1x1xi32>
    %78 = vector.extract_strided_slice %14 {offsets = [3, 0], sizes = [1, 16], strides = [1, 1]} : vector<4x16xf32> to vector<1x16xf32>
    %cst_23 = arith.constant 9.900000e-01 : f32
    %79 = vector.broadcast %cst_23 : f32 to vector<8x16xf32>
    %80 = arith.mulf %76, %79 : vector<8x16xf32>
    %cst_24 = arith.constant 0.00999999977 : f32
    %81 = vector.broadcast %cst_24 : f32 to vector<1x16xf32>
    %82 = arith.mulf %81, %78 : vector<1x16xf32>
    %83 = vector.broadcast %82 : vector<1x16xf32> to vector<8x16xf32>
    %84 = arith.addf %80, %83 : vector<8x16xf32>
    %85 = vector.broadcast %77 : vector<1x1xi32> to vector<8x1xi32>
    %86 = arith.cmpi eq, %37, %85 : vector<8x1xi32>
    %87 = vector.shape_cast %86 : vector<8x1xi1> to vector<8x1xi1>
    %88 = vector.broadcast %87 : vector<8x1xi1> to vector<8x16xi1>
    %89 = arith.select %88, %84, %76 : vector<8x16xi1>, vector<8x16xf32>
    %90 = arith.mulf %89, %89 : vector<8x16xf32>
    %cst_25 = arith.constant dense<0.000000e+00> : vector<8xf32>
    %91 = vector.multi_reduction <add>, %90, %cst_25 [1] : vector<8x16xf32> to vector<8xf32>
    %92 = vector.shape_cast %91 : vector<8xf32> to vector<8x1xf32>
    %cst_26 = arith.constant 1.000000e-24 : f32
    %93 = vector.broadcast %cst_26 : f32 to vector<8x1xf32>
    %94 = arith.maximumf %92, %93 : vector<8x1xf32>
    %95 = math.rsqrt %94 : vector<8x1xf32>
    %96 = vector.broadcast %95 : vector<8x1xf32> to vector<8x16xf32>
    %97 = arith.mulf %89, %96 : vector<8x16xf32>
    %c0_27 = arith.constant 0 : index
    %c0_28 = arith.constant 0 : index
    %98 = vector.load %arg6[%c0_27, %c0_28] : memref<8x16xf32, #tpu.memory_space<vmem>>, vector<8x16xf32>
    tpu.vector_store %arg6[%c0_27, %c0_28], %97 {strides = array<i32>} : memref<8x16xf32, #tpu.memory_space<vmem>>, vector<8x16xf32>,
    return
  }
}

module attributes {stable_mosaic.version = 11 : i64} {
  func.func @_encoder_kernel(%arg0: i32, %arg1: memref<1x1024x128xf32, #tpu.memory_space<vmem>>, %arg2: memref<1x128x32xf32, #tpu.memory_space<vmem>>, %arg3: memref<1x1x32xf32, #tpu.memory_space<vmem>>, %arg4: memref<1x32x8xf32, #tpu.memory_space<vmem>>, %arg5: memref<1x1x8xf32, #tpu.memory_space<vmem>>, %arg6: memref<1x32x16xf32, #tpu.memory_space<vmem>>, %arg7: memref<1x1x16xf32, #tpu.memory_space<vmem>>, %arg8: memref<1x4x8xf32, #tpu.memory_space<vmem>>, %arg9: memref<1x4x16xf32, #tpu.memory_space<vmem>>) attributes {dimension_semantics = [#tpu.dimension_semantics<parallel>], iteration_bounds = array<i64: 2>, scalar_prefetch = 0 : i64, scratch_operands = 0 : i64, tpu.core_type = #tpu.core_type<tc>, window_params = [{transform_indices = @transform_0, window_bounds = array<i64: 1, 1024, 128>}, {transform_indices = @transform_1, window_bounds = array<i64: 1, 128, 32>}, {transform_indices = @transform_2, window_bounds = array<i64: 1, 1, 32>}, {transform_indices = @transform_3, window_bounds = array<i64: 1, 32, 8>}, {transform_indices = @transform_4, window_bounds = array<i64: 1, 1, 8>}, {transform_indices = @transform_5, window_bounds = array<i64: 1, 32, 16>}, {transform_indices = @transform_6, window_bounds = array<i64: 1, 1, 16>}, {transform_indices = @transform_7, window_bounds = array<i64: 1, 4, 8>}, {transform_indices = @transform_8, window_bounds = array<i64: 1, 4, 16>}]} {
    %c0 = arith.constant 0 : index
    %c0_0 = arith.constant 0 : index
    %c0_1 = arith.constant 0 : index
    %0 = vector.load %arg1[%c0, %c0_0, %c0_1] : memref<1x1024x128xf32, #tpu.memory_space<vmem>>, vector<1x1024x128xf32>
    %1 = vector.shape_cast %0 : vector<1x1024x128xf32> to vector<1024x128xf32>
    %c0_2 = arith.constant 0 : index
    %c0_3 = arith.constant 0 : index
    %c0_4 = arith.constant 0 : index
    %2 = vector.load %arg2[%c0_2, %c0_3, %c0_4] : memref<1x128x32xf32, #tpu.memory_space<vmem>>, vector<1x128x32xf32>
    %3 = vector.shape_cast %2 : vector<1x128x32xf32> to vector<128x32xf32>
    %cst = arith.constant dense<0.000000e+00> : vector<1024x32xf32>
    %4 = tpu.matmul %1, %3, %cst {dimension_numbers = #tpu.dot_dimension_numbers<[1], [0], [0], [1], [0, 0, 1, 1], [], []>} : vector<1024x128xf32>, vector<128x32xf32>, vector<1024x32xf32> -> vector<1024x32xf32>
    %c0_5 = arith.constant 0 : index
    %c0_6 = arith.constant 0 : index
    %c0_7 = arith.constant 0 : index
    %5 = vector.load %arg3[%c0_5, %c0_6, %c0_7] : memref<1x1x32xf32, #tpu.memory_space<vmem>>, vector<1x1x32xf32>
    %6 = vector.shape_cast %5 : vector<1x1x32xf32> to vector<1x32xf32>
    %7 = vector.broadcast %6 : vector<1x32xf32> to vector<1024x32xf32>
    %8 = arith.addf %4, %7 : vector<1024x32xf32>
    %cst_8 = arith.constant 0.000000e+00 : f32
    %9 = vector.broadcast %cst_8 : f32 to vector<1024x32xf32>
    %10 = arith.maximumf %8, %9 : vector<1024x32xf32>
    %11 = vector.shape_cast %10 : vector<1024x32xf32> to vector<4x256x32xf32>
    %cst_9 = arith.constant dense<0.000000e+00> : vector<4x32xf32>
    %12 = vector.multi_reduction <add>, %11, %cst_9 [1] : vector<4x256x32xf32> to vector<4x32xf32>
    %cst_10 = arith.constant 3.906250e-03 : f32
    %13 = vector.broadcast %cst_10 : f32 to vector<4x32xf32>
    %14 = arith.mulf %12, %13 : vector<4x32xf32>
    %c0_11 = arith.constant 0 : index
    %c0_12 = arith.constant 0 : index
    %c0_13 = arith.constant 0 : index
    %15 = vector.load %arg4[%c0_11, %c0_12, %c0_13] : memref<1x32x8xf32, #tpu.memory_space<vmem>>, vector<1x32x8xf32>
    %16 = vector.shape_cast %15 : vector<1x32x8xf32> to vector<32x8xf32>
    %cst_14 = arith.constant dense<0.000000e+00> : vector<4x8xf32>
    %17 = tpu.matmul %14, %16, %cst_14 {dimension_numbers = #tpu.dot_dimension_numbers<[1], [0], [0], [1], [0, 0, 1, 1], [], []>} : vector<4x32xf32>, vector<32x8xf32>, vector<4x8xf32> -> vector<4x8xf32>
    %c0_15 = arith.constant 0 : index
    %c0_16 = arith.constant 0 : index
    %c0_17 = arith.constant 0 : index
    %18 = vector.load %arg5[%c0_15, %c0_16, %c0_17] : memref<1x1x8xf32, #tpu.memory_space<vmem>>, vector<1x1x8xf32>
    %19 = vector.shape_cast %18 : vector<1x1x8xf32> to vector<1x8xf32>
    %20 = vector.broadcast %19 : vector<1x8xf32> to vector<4x8xf32>
    %21 = arith.addf %17, %20 : vector<4x8xf32>
    %c0_18 = arith.constant 0 : index
    %c0_19 = arith.constant 0 : index
    %c0_20 = arith.constant 0 : index
    %22 = vector.load %arg8[%c0_18, %c0_19, %c0_20] : memref<1x4x8xf32, #tpu.memory_space<vmem>>, vector<1x4x8xf32>
    %23 = vector.shape_cast %22 : vector<1x4x8xf32> to vector<4x8xf32>
    %24 = vector.shape_cast %21 : vector<4x8xf32> to vector<1x4x8xf32>
    tpu.vector_store %arg8[%c0_18, %c0_19, %c0_20], %24 {strides = array<i32>} : memref<1x4x8xf32, #tpu.memory_space<vmem>>, vector<1x4x8xf32>,
    %c0_21 = arith.constant 0 : index
    %c0_22 = arith.constant 0 : index
    %c0_23 = arith.constant 0 : index
    %25 = vector.load %arg6[%c0_21, %c0_22, %c0_23] : memref<1x32x16xf32, #tpu.memory_space<vmem>>, vector<1x32x16xf32>
    %26 = vector.shape_cast %25 : vector<1x32x16xf32> to vector<32x16xf32>
    %cst_24 = arith.constant dense<0.000000e+00> : vector<4x16xf32>
    %27 = tpu.matmul %14, %26, %cst_24 {dimension_numbers = #tpu.dot_dimension_numbers<[1], [0], [0], [1], [0, 0, 1, 1], [], []>} : vector<4x32xf32>, vector<32x16xf32>, vector<4x16xf32> -> vector<4x16xf32>
    %c0_25 = arith.constant 0 : index
    %c0_26 = arith.constant 0 : index
    %c0_27 = arith.constant 0 : index
    %28 = vector.load %arg7[%c0_25, %c0_26, %c0_27] : memref<1x1x16xf32, #tpu.memory_space<vmem>>, vector<1x1x16xf32>
    %29 = vector.shape_cast %28 : vector<1x1x16xf32> to vector<1x16xf32>
    %30 = vector.broadcast %29 : vector<1x16xf32> to vector<4x16xf32>
    %31 = arith.addf %27, %30 : vector<4x16xf32>
    %32 = arith.mulf %31, %31 : vector<4x16xf32>
    %cst_28 = arith.constant dense<0.000000e+00> : vector<4xf32>
    %33 = vector.multi_reduction <add>, %32, %cst_28 [1] : vector<4x16xf32> to vector<4xf32>
    %34 = vector.shape_cast %33 : vector<4xf32> to vector<4x1xf32>
    %cst_29 = arith.constant 1.000000e-24 : f32
    %35 = vector.broadcast %cst_29 : f32 to vector<4x1xf32>
    %36 = arith.maximumf %34, %35 : vector<4x1xf32>
    %37 = math.rsqrt %36 : vector<4x1xf32>
    %38 = vector.broadcast %37 : vector<4x1xf32> to vector<4x16xf32>
    %39 = arith.mulf %31, %38 : vector<4x16xf32>
    %c0_30 = arith.constant 0 : index
    %c0_31 = arith.constant 0 : index
    %c0_32 = arith.constant 0 : index
    %40 = vector.load %arg9[%c0_30, %c0_31, %c0_32] : memref<1x4x16xf32, #tpu.memory_space<vmem>>, vector<1x4x16xf32>
    %41 = vector.shape_cast %40 : vector<1x4x16xf32> to vector<4x16xf32>
    %42 = vector.shape_cast %39 : vector<4x16xf32> to vector<1x4x16xf32>
    tpu.vector_store %arg9[%c0_30, %c0_31, %c0_32], %42 {strides = array<i32>} : memref<1x4x16xf32, #tpu.memory_space<vmem>>, vector<1x4x16xf32>,
    return
  }
  func.func @transform_0(%arg0: i32) -> (i32, i32, i32) {
    %c0_i32 = arith.constant 0 : i32
    %c0_i32_0 = arith.constant 0 : i32
    %c0_i32_1 = arith.constant 0 : i32
    return %arg0, %c0_i32, %c0_i32_0 : i32, i32, i32
  }
  func.func @transform_1(%arg0: i32) -> (i32, i32, i32) {
    %c0_i32 = arith.constant 0 : i32
    %c0_i32_0 = arith.constant 0 : i32
    %c0_i32_1 = arith.constant 0 : i32
    return %arg0, %c0_i32, %c0_i32_0 : i32, i32, i32
  }
  func.func @transform_2(%arg0: i32) -> (i32, i32, i32) {
    %c0_i32 = arith.constant 0 : i32
    %c0_i32_0 = arith.constant 0 : i32
    %c0_i32_1 = arith.constant 0 : i32
    return %arg0, %c0_i32, %c0_i32_0 : i32, i32, i32
  }
  func.func @transform_3(%arg0: i32) -> (i32, i32, i32) {
    %c0_i32 = arith.constant 0 : i32
    %c0_i32_0 = arith.constant 0 : i32
    %c0_i32_1 = arith.constant 0 : i32
    return %arg0, %c0_i32, %c0_i32_0 : i32, i32, i32
  }
  func.func @transform_4(%arg0: i32) -> (i32, i32, i32) {
    %c0_i32 = arith.constant 0 : i32
    %c0_i32_0 = arith.constant 0 : i32
    %c0_i32_1 = arith.constant 0 : i32
    return %arg0, %c0_i32, %c0_i32_0 : i32, i32, i32
  }
  func.func @transform_5(%arg0: i32) -> (i32, i32, i32) {
    %c0_i32 = arith.constant 0 : i32
    %c0_i32_0 = arith.constant 0 : i32
    %c0_i32_1 = arith.constant 0 : i32
    return %arg0, %c0_i32, %c0_i32_0 : i32, i32, i32
  }
  func.func @transform_6(%arg0: i32) -> (i32, i32, i32) {
    %c0_i32 = arith.constant 0 : i32
    %c0_i32_0 = arith.constant 0 : i32
    %c0_i32_1 = arith.constant 0 : i32
    return %arg0, %c0_i32, %c0_i32_0 : i32, i32, i32
  }
  func.func @transform_7(%arg0: i32) -> (i32, i32, i32) {
    %c0_i32 = arith.constant 0 : i32
    %c0_i32_0 = arith.constant 0 : i32
    %c0_i32_1 = arith.constant 0 : i32
    return %arg0, %c0_i32, %c0_i32_0 : i32, i32, i32
  }
  func.func @transform_8(%arg0: i32) -> (i32, i32, i32) {
    %c0_i32 = arith.constant 0 : i32
    %c0_i32_0 = arith.constant 0 : i32
    %c0_i32_1 = arith.constant 0 : i32
    return %arg0, %c0_i32, %c0_i32_0 : i32, i32, i32
  }
}

</mosaic_0001>

<llo_original>
// kernel: pico_forward.3
$region0: #{pico_forward.3}
  #allocation0 [shape = 'u32[]', space=smem, size = 0x4, offset = 0x4, fixed_abs, tag = 'smem constant byte address 0x4 - core index']
  #allocation1 [shape = 'u32[144,128]{1,0:T(1,128)}', space=vmem, size = 0x12000, scoped, tag = 'internal scratch']
  %s0 = inlined_call_operand.vmem [shape: f32[40,128], index: 0, kind: input, shape index: {}]
  %s1 = inlined_call_operand.vmem [shape: f32[40,128], index: 1, kind: input, shape index: {}]
  %s2 = inlined_call_operand.vmem [shape: f32[40,128], index: 2, kind: output, shape index: {}]
  %s3 = sld [smem:[#allocation0]]
  $region18: #{pico_forward.3} parent=0
    _
  %s5 = ssub.s32 1, %s3
  %s6 = scalar_select 0, %s5, %s3
  // Predicated region
  $region2: #{pico_forward.3} parent=0 // pred_check
    _
  $region3: #{pico_forward.3} parent=0 // pred_check_branch
    %8 = sbr.rel (0) target = $region5
  $region4: #{pico_forward.3} parent=0 // pred_region
    _
  $region5: #{pico_forward.3} parent=0 // pred_fallthru
    _
  // Predicated region
  $region6: #{pico_forward.3} parent=0 // pred_check
    _
  $region7: #{pico_forward.3} parent=0 // pred_check_branch
    %10 = sbr.rel (0) target = $region9
  $region8: #{pico_forward.3} parent=0 // pred_region
    _
  $region9: #{pico_forward.3} parent=0 // pred_fallthru
    _
  %v11 = vld [vmem:[%s0] sm:$0xff]
  %v12 = vld [vmem:[%s0 + $0x8] sm:$0xff]
  %v13 = vld [vmem:[%s0 + $0x10] sm:$0xff]
  %v14 = vld [vmem:[%s0 + $0x18] sm:$0xff]
  %v15 = vld [vmem:[%s0 + $0x20] sm:$0xff]
  %v16 = vmul.f32 %v11, 0.999
  %v17 = vmul.f32 %v12, 0.999
  %v18 = vmul.f32 %v13, 0.999
  %v19 = vmul.f32 %v14, 0.999
  %v20 = vmul.f32 %v15, 0.999
  %v21 = vld [vmem:[%s1] sm:$0xff]
  %v22 = vld [vmem:[%s1 + $0x8] sm:$0xff]
  %v23 = vld [vmem:[%s1 + $0x10] sm:$0xff]
  %v24 = vld [vmem:[%s1 + $0x18] sm:$0xff]
  %v25 = vld [vmem:[%s1 + $0x20] sm:$0xff]
  %v26 = vmul.f32 %v21, 0.001
  %v27 = vmul.f32 %v22, 0.001
  %v28 = vmul.f32 %v23, 0.001
  %v29 = vmul.f32 %v24, 0.001
  %v30 = vmul.f32 %v25, 0.001
  %v31 = vadd.f32 %v16, %v26
  %v32 = vadd.f32 %v17, %v27
  %v33 = vadd.f32 %v18, %v28
  %v34 = vadd.f32 %v19, %v29
  %v35 = vadd.f32 %v20, %v30
  %36 = vst [vmem:[%s2] sm:$0xff] %v31
  %37 = vst [vmem:[%s2 + $0x8] sm:$0xff] %v32
  %38 = vst [vmem:[%s2 + $0x10] sm:$0xff] %v33
  %39 = vst [vmem:[%s2 + $0x18] sm:$0xff] %v34
  %40 = vst [vmem:[%s2 + $0x20] sm:$0xff] %v35
  // Predicated region
  $region10: #{pico_forward.3} parent=0 // pred_check
    _
  $region11: #{pico_forward.3} parent=0 // pred_check_branch
    %42 = sbr.rel (0) target = $region13
  $region12: #{pico_forward.3} parent=0 // pred_region
    _
  $region13: #{pico_forward.3} parent=0 // pred_fallthru
    _
  // Predicated region
  $region14: #{pico_forward.3} parent=0 // pred_check
    _
  $region15: #{pico_forward.3} parent=0 // pred_check_branch
    %44 = sbr.rel (0) target = $region17
  $region16: #{pico_forward.3} parent=0 // pred_region
    _
  $region17: #{pico_forward.3} parent=0 // pred_fallthru
    _

// kernel: pico_forward.5
$region0: #{pico_forward.5}
  #allocation0 [shape = 'u32[]', space=smem, size = 0x4, offset = 0x4, fixed_abs, tag = 'smem constant byte address 0x4 - core index']
  #allocation1 [shape = 'u32[144,128]{1,0:T(1,128)}', space=vmem, size = 0x12000, scoped, tag = 'internal scratch']
  %s0 = inlined_call_operand.vmem [shape: f32[4,8], index: 0, kind: input, shape index: {}]
  %s1 = inlined_call_operand.vmem [shape: f32[4,8], index: 1, kind: input, shape index: {}]
  %s2 = inlined_call_operand.vmem [shape: f32[4,16], index: 2, kind: input, shape index: {}]
  %s3 = inlined_call_operand.vmem [shape: f32[8,16], index: 3, kind: input, shape index: {}]
  %s4 = inlined_call_operand.vmem [shape: f32[4,8], index: 4, kind: output, shape index: {0}]
  %s5 = inlined_call_operand.hbm [shape: f32[4,8], index: 5, kind: output, shape index: {1}]
  %s6 = inlined_call_operand.hbm [shape: f32[8,16], index: 6, kind: output, shape index: {2}]
  %7 = xla_tuple %s4, %s5, %s6
  %s8 = sld [smem:[#allocation0]]
  $region42: #{pico_forward.5} parent=0
    _
  %s10 = ssub.s32 1, %s8
  %s11 = scalar_select 0, %s10, %s8
  $region1: #{pico_forward.5} parent=0
    #allocation2 [shape = 'u8[2048]{0}', space=vmem, size = 0x800, scoped, tag = 'output window, operand 1, single buffered']
    #allocation3 [shape = 's32[1]{0}', space=sflag, size = 0x4, scoped, tag = 'scoped memory for pico_forward.5']
    #allocation4 [shape = 'u8[4096]{0}', space=vmem, size = 0x1000, scoped, tag = 'output window, operand 2, single buffered']
    #allocation5 [shape = 's32[1]{0}', space=sflag, size = 0x4, scoped, tag = 'scoped memory for pico_forward.5']
    %12 = vsyncpa [#allocation3], 0
    %13 = vsyncpa [#allocation5], 0
    // Predicated region
    $region2: #{pico_forward.5} parent=1 // pred_check
      _
    $region3: #{pico_forward.5} parent=1 // pred_check_branch
      %15 = sbr.rel (0) target = $region5
    $region4: #{pico_forward.5} parent=1 // pred_region
      _
    $region5: #{pico_forward.5} parent=1 // pred_fallthru
      _
    // Predicated region
    $region6: #{pico_forward.5} parent=1 // pred_check
      _
    $region7: #{pico_forward.5} parent=1 // pred_check_branch
      %17 = sbr.rel (0) target = $region9
    $region8: #{pico_forward.5} parent=1 // pred_region
      _
    $region9: #{pico_forward.5} parent=1 // pred_fallthru
      _
    // Predicated region
    $region10: #{pico_forward.5} parent=1 // pred_check
      _
    $region11: #{pico_forward.5} parent=1 // pred_check_branch
      %19 = sbr.rel (0) target = $region13
    $region12: #{pico_forward.5} parent=1 // pred_region
      _
    $region13: #{pico_forward.5} parent=1 // pred_fallthru
      _
    // Predicated region
    $region14: #{pico_forward.5} parent=1 // pred_check
      _
    $region15: #{pico_forward.5} parent=1 // pred_check_branch
      %21 = sbr.rel (0) target = $region17
    $region16: #{pico_forward.5} parent=1 // pred_region
      _
    $region17: #{pico_forward.5} parent=1 // pred_fallthru
      _
    %v22 = vld [vmem:[%s0] sm:$0xf]
    %vm23 = vcmask 60416
    %v24 = vsel %vm23, %v22, -inf
    %25 = vmax.xlane.f32.xlu0 %v24
    %v26 = vpop.xlane.xlu0 %25
    %v27 = vsub.f32 %v22, %v26
    %v28 = vmul.f32 %v27, 1.442695
    %v29 = vpow.pop %v28
    %v30 = vsel %vm23, %v29, 0.0
    %31 = vadd.xlane.f32.xlu0 %v30
    %v32 = vpop.xlane.xlu0 %31
    %v33 = vrcp.pop %v32
    %v34 = vmul.f32 %v29, %v33
    %v35 = vld [vmem:[%s1] sm:$0xf]
    %v36 = vmul.f32 %v34, %v35
    %37 = vst.msk [vmem:[%s4] sm:$0xf] %vm23, %v36
    %v38 = vld [vmem:[%s2] sm:$0xf]
    %v39 = vld [vmem:[%s3] sm:$0xff]
    %vm40 = vcmask 130048
    %v42 = vsel %vm40, %v38, 0
    %v45 = vsel %vm40, %v39, 0
    %47 = vmatprep.subr.mxu0 0.0
    %48 = vmatpush1.xpose.msra.mxu0 %v45
    %49 = vmatprep.subr.mxu0 0.0
    %50 = vmatpush1.xpose.msra.mxu0 0.0
    %51 = vmatprep.subr.mxu0 0.0
    %52 = vmatpush1.xpose.msra.mxu0 0.0
    %53 = vmatprep.subr.mxu0 0.0
    %54 = vmatpush1.xpose.msra.mxu0 0.0
    %55 = vmatprep.subr.mxu0 0.0
    %56 = vmatpush1.xpose.msra.mxu0 0.0
    %57 = vmatprep.subr.mxu0 0.0
    %58 = vmatpush1.xpose.msra.mxu0 0.0
    %59 = vmatprep.subr.mxu0 0.0
    %60 = vmatpush1.xpose.msra.mxu0 0.0
    %61 = vmatprep.subr.mxu0 0.0
    %62 = vmatpush1.xpose.msra.mxu0 0.0
    %63 = vmatprep.subr.mxu0 0.0
    %64 = vmatpush1.xpose.msra.mxu0 0.0
    %65 = vmatprep.subr.mxu0 0.0
    %66 = vmatpush1.xpose.msra.mxu0 0.0
    %67 = vmatprep.subr.mxu0 0.0
    %68 = vmatpush1.xpose.msra.mxu0 0.0
    %69 = vmatprep.subr.mxu0 0.0
    %70 = vmatpush1.xpose.msra.mxu0 0.0
    %71 = vmatprep.subr.mxu0 0.0
    %72 = vmatpush1.xpose.msra.mxu0 0.0
    %73 = vmatprep.subr.mxu0 0.0
    %74 = vmatpush1.xpose.msra.mxu0 0.0
    %75 = vmatprep.subr.mxu0 0.0
    %76 = vmatpush1.xpose.msra.mxu0 0.0
    %77 = vmatprep.subr.mxu0 0.0
    %78 = vmatpush1.xpose.msra.mxu0 0.0
    %79 = vmatprep.subr.mxu0 0.0
    %80 = vmatpush1.xpose.msra.mxu0 0.0
    %81 = vmatprep.subr.mxu0 0.0
    %82 = vmatpush1.xpose.msra.mxu0 0.0
    %83 = vmatprep.subr.mxu0 0.0
    %84 = vmatpush1.xpose.msra.mxu0 0.0
    %85 = vmatprep.subr.mxu0 0.0
    %86 = vmatpush1.xpose.msra.mxu0 0.0
    %87 = vmatprep.subr.mxu0 0.0
    %88 = vmatpush1.xpose.msra.mxu0 0.0
    %89 = vmatprep.subr.mxu0 0.0
    %90 = vmatpush1.xpose.msra.mxu0 0.0
    %91 = vmatprep.subr.mxu0 0.0
    %92 = vmatpush1.xpose.msra.mxu0 0.0
    %93 = vmatprep.subr.mxu0 0.0
    %94 = vmatpush1.xpose.msra.mxu0 0.0
    %95 = vmatprep.subr.mxu0 0.0
    %96 = vmatpush1.xpose.msra.mxu0 0.0
    %97 = vmatprep.subr.mxu0 0.0
    %98 = vmatpush1.xpose.msra.mxu0 0.0
    %99 = vmatprep.subr.mxu0 0.0
    %100 = vmatpush1.xpose.msra.mxu0 0.0
    %101 = vmatprep.subr.mxu0 0.0
    %102 = vmatpush1.xpose.msra.mxu0 0.0
    %103 = vmatprep.subr.mxu0 0.0
    %104 = vmatpush1.xpose.msra.mxu0 0.0
    %105 = vmatprep.subr.mxu0 0.0
    %106 = vmatpush1.xpose.msra.mxu0 0.0
    %107 = vmatprep.subr.mxu0 0.0
    %108 = vmatpush1.xpose.msra.mxu0 0.0
    %109 = vmatprep.subr.mxu0 0.0
    %110 = vmatpush1.xpose.msra.mxu0 0.0
    %111 = vmatprep.mubr.f32.mxu0 0.0
    %112 = vmatmul.mubr.f32.gmra.mrb[0].mxu0 %v42
    %v113 = vpop.f32.mrb[0].mxu0
    %v114 = vadd.f32 0.0, %v113
    %v115 = vpop.f32.mrb[0].mxu0
    %116 = vdwg.mxu0
    %v117 = vsel %vm23, %v114, -inf
    %118 = vmax.xlane.f32.xlu0 %v117
    %v119 = vpop.xlane.xlu0 %118
    %v120 = vsub.f32 %v114, %v119
    %v121 = vmul.f32 %v120, 1.442695
    %v122 = vpow.pop %v121
    %v123 = vsel %vm23, %v122, 0.0
    %124 = vadd.xlane.f32.xlu0 %v123
    %v125 = vpop.xlane.xlu0 %124
    %v126 = vrcp.pop %v125
    %v127 = vmul.f32 %v122, %v126
    %128 = vst.msk [vmem:[#allocation2] sm:$0xf] %vm23, %v127
    %v129 = vsel %vm23, %v36, -inf
    %130 = vmax.xlane.f32.xlu0 %v129
    %v131 = vpop.xlane.xlu0 %130
    %v132 = vlaneseq
    %v133 = vand.u32 %v132, 127
    %vm134 = vcmp.eq.f32.partialorder %v36, %v131
    %v135 = vsel %vm134, %v133, 8
    %v136 = vsel %vm23, %v135, 2147483647
    %v137 = vand.u32 %v136, 65535
    %v138 = vshra.s32 %v136, 16
    %v139 = vcvt.s32.f32 %v137
    %v140 = vcvt.s32.f32 %v138
    %141 = vmin.xlane.f32.xlu0 %v140
    %v142 = vpop.xlane.xlu0 %141
    %vm143 = vcmp.eq.f32.partialorder %v140, %v142
    %v144 = vsel %vm143, %v139, inf
    %145 = vmin.xlane.f32.xlu0 %v144
    %v146 = vpop.xlane.xlu0 %145
    %v147 = vcvt.f32.s32 %v146
    %v148 = vcvt.f32.s32 %v142
    %v149 = vshll.u32 %v148, 16
    %v150 = vadd.s32 %v149, %v147
    %v151 = vlaneseq
    %v152 = vshrl.u32 %v151, 7
    %v153 = vmul.f32 %v39, 0.99
    %v154 = vmul.f32 %v38, 0.01
    %v155 = vlaneseq
    %v156 = vshrl.u32 %v155, 7
    %v157 = vsub.s32 0, %v156
    %v158 = vrot.slane %v154, %v157
    %v159 = vadd.f32 %v153, %v158
    %v160 = vlaneseq
    %v161 = vshrl.u32 %v160, 7
    %v162 = vsub.s32 0, %v161
    %v163 = vrot.slane %v150, %v162
    %vm164 = vcmp.eq.s32.totalorder %v152, %v163
    %v165 = vsel %vm164, 1, 0
    %vm166 = vcmp.eq.s32.totalorder %v165, 1
    %v167 = vsel %vm166, %v159, %v39
    %v168 = vmul.f32 %v167, 0.99
    %v169 = vlaneseq
    %v170 = vshrl.u32 %v169, 7
    %v171 = vsub.s32 1, %v170
    %v172 = vrot.slane %v154, %v171
    %v173 = vadd.f32 %v168, %v172
    %v174 = vlaneseq
    %v175 = vshrl.u32 %v174, 7
    %v176 = vsub.s32 1, %v175
    %v177 = vrot.slane %v150, %v176
    %vm178 = vcmp.eq.s32.totalorder %v152, %v177
    %v179 = vsel %vm178, 1, 0
    %vm180 = vcmp.eq.s32.totalorder %v179, 1
    %v181 = vsel %vm180, %v173, %v167
    %v182 = vmul.f32 %v181, 0.99
    %v183 = vlaneseq
    %v184 = vshrl.u32 %v183, 7
    %v185 = vsub.s32 2, %v184
    %v186 = vrot.slane %v154, %v185
    %v187 = vadd.f32 %v182, %v186
    %v188 = vlaneseq
    %v189 = vshrl.u32 %v188, 7
    %v190 = vsub.s32 2, %v189
    %v191 = vrot.slane %v150, %v190
    %vm192 = vcmp.eq.s32.totalorder %v152, %v191
    %v193 = vsel %vm192, 1, 0
    %vm194 = vcmp.eq.s32.totalorder %v193, 1
    %v195 = vsel %vm194, %v187, %v181
    %v196 = vmul.f32 %v195, 0.99
    %v197 = vlaneseq
    %v198 = vshrl.u32 %v197, 7
    %v199 = vsub.s32 3, %v198
    %v200 = vrot.slane %v154, %v199
    %v201 = vadd.f32 %v196, %v200
    %v202 = vlaneseq
    %v203 = vshrl.u32 %v202, 7
    %v204 = vsub.s32 3, %v203
    %v205 = vrot.slane %v150, %v204
    %vm206 = vcmp.eq.s32.totalorder %v152, %v205
    %v207 = vsel %vm206, 1, 0
    %vm208 = vcmp.eq.s32.totalorder %v207, 1
    %v209 = vsel %vm208, %v201, %v195
    %v210 = vmul.f32 %v209, %v209
    %v211 = vsel %vm40, %v210, 0.0
    %212 = vadd.xlane.f32.xlu0 %v211
    %v213 = vpop.xlane.xlu0 %212
    %v214 = vmax.f32 %v213, 1e-24
    %v215 = vrsqrt.pop %v214
    %v216 = vmul.f32 %v209, %v215
    %217 = vst.msk [vmem:[#allocation4] sm:$0xff] %vm40, %v216
    // Predicated region
    $region18: #{pico_forward.5} parent=1 // pred_check
      _
    $region19: #{pico_forward.5} parent=1 // pred_check_branch
      %219 = sbr.rel (0) target = $region21
    $region20: #{pico_forward.5} parent=1 // pred_region
      _
    $region21: #{pico_forward.5} parent=1 // pred_fallthru
      _
    // Predicated region
    $region22: #{pico_forward.5} parent=1 // pred_check
      _
    $region23: #{pico_forward.5} parent=1 // pred_check_branch
      %221 = sbr.rel (0) target = $region25
    $region24: #{pico_forward.5} parent=1 // pred_region
      %s223 = ssub.s32 64, 64
      %224 = vsyncadd [#allocation3], %s223
      %s226 = sshll.u32 [#allocation2], 4
      %s227 = int_to_ptr.vmem [resolvable:$true] %s226
      %229 = dma.vmem_to_hbm [thread:$0]  %s227, 64, %s5, [#allocation3]
    $region25: #{pico_forward.5} parent=1 // pred_fallthru
      _
    // Predicated region
    $region26: #{pico_forward.5} parent=1 // pred_check
      _
    $region27: #{pico_forward.5} parent=1 // pred_check_branch
      %231 = sbr.rel (0) target = $region29
    $region28: #{pico_forward.5} parent=1 // pred_region
      %s233 = ssub.s32 128, 128
      %234 = vsyncadd [#allocation5], %s233
      %s236 = sshll.u32 [#allocation4], 4
      %s237 = int_to_ptr.vmem [resolvable:$true] %s236
      %239 = dma.vmem_to_hbm [thread:$0]  %s237, 128, %s6, [#allocation5]
    $region29: #{pico_forward.5} parent=1 // pred_fallthru
      _
    // Predicated region
    $region30: #{pico_forward.5} parent=1 // pred_check
      _
    $region31: #{pico_forward.5} parent=1 // pred_check_branch
      %241 = sbr.rel (0) target = $region33
    $region32: #{pico_forward.5} parent=1 // pred_region
      _
    $region33: #{pico_forward.5} parent=1 // pred_fallthru
      _
    // Predicated region
    $region34: #{pico_forward.5} parent=1 // pred_check
      _
    $region35: #{pico_forward.5} parent=1 // pred_check_branch
      %243 = sbr.rel (0) target = $region37
    $region36: #{pico_forward.5} parent=1 // pred_region
      %244 = dma.done [#allocation3], 64
    $region37: #{pico_forward.5} parent=1 // pred_fallthru
      _
    // Predicated region
    $region38: #{pico_forward.5} parent=1 // pred_check
      _
    $region39: #{pico_forward.5} parent=1 // pred_check_branch
      %246 = sbr.rel (0) target = $region41
    $region40: #{pico_forward.5} parent=1 // pred_region
      %247 = dma.done [#allocation5], 128
    $region41: #{pico_forward.5} parent=1 // pred_fallthru
      _
    %248 = vsyncpa [#allocation3], 1
    %249 = vsyncpa [#allocation5], 1

// kernel: pico_forward.4
$region0: #{pico_forward.4}
  #allocation0 [shape = 'u32[]', space=smem, size = 0x4, offset = 0x4, fixed_abs, tag = 'smem constant byte address 0x4 - core index']
  #allocation1 [shape = 'u32[144,128]{1,0:T(1,128)}', space=vmem, size = 0x12000, scoped, tag = 'internal scratch']
  %s0 = inlined_call_operand.vmem [shape: f32[2,1024,128], index: 0, kind: input, shape index: {}]
  %s1 = inlined_call_operand.vmem [shape: f32[2,128,32], index: 1, kind: input, shape index: {}]
  %s2 = inlined_call_operand.vmem [shape: f32[2,1,32], index: 2, kind: input, shape index: {}]
  %s3 = inlined_call_operand.vmem [shape: f32[2,32,8], index: 3, kind: input, shape index: {}]
  %s4 = inlined_call_operand.vmem [shape: f32[2,1,8], index: 4, kind: input, shape index: {}]
  %s5 = inlined_call_operand.vmem [shape: f32[2,32,16], index: 5, kind: input, shape index: {}]
  %s6 = inlined_call_operand.vmem [shape: f32[2,1,16], index: 6, kind: input, shape index: {}]
  %s7 = inlined_call_operand.vmem [shape: f32[2,4,8], index: 7, kind: output, shape index: {0}]
  %s8 = inlined_call_operand.vmem [shape: f32[2,4,16], index: 8, kind: output, shape index: {1}]
  %9 = xla_tuple %s7, %s8
  %s10 = sld [smem:[#allocation0]]
  $region69: #{pico_forward.4} parent=0
    _
  %s12 = ssub.s32 1, %s10
  %s13 = scalar_select 0, %s12, %s10
  loop: start=0, step=1, limit=4
  $region2: #{pico_forward.4} parent=0 // loop_pre_header
    _
  $region3: #{pico_forward.4} parent=0 // loop_header
    %s15 = sphi 0, %s19
    %p16 = scmp.ge.s32.totalorder %s15, 4
    %s25 = sphi 0, %s27
    %s28 = sphi 0, %s25
    %s29 = sphi 0, %s28
    %s45 = sphi 0, %s29
    %s51 = sphi 0, %s53
    %s54 = sphi 0, %s51
    %s55 = sphi 0, %s54
    %s71 = sphi 0, %s55
    %s77 = sphi 0, %s79
    %s80 = sphi 0, %s77
    %s81 = sphi 0, %s80
    %s97 = sphi 0, %s81
    %s103 = sphi 0, %s105
    %s106 = sphi 0, %s103
    %s107 = sphi 0, %s106
    %s123 = sphi 0, %s107
    %s129 = sphi 0, %s131
    %s132 = sphi 0, %s129
    %s133 = sphi 0, %s132
    %s149 = sphi 0, %s133
    %s155 = sphi 0, %s157
    %s158 = sphi 0, %s155
    %s159 = sphi 0, %s158
    %s175 = sphi 0, %s159
    %s181 = sphi 0, %s183
    %s184 = sphi 0, %s181
    %s185 = sphi 0, %s184
    %s201 = sphi 0, %s185
    %s207 = sphi 0, %s209
    %s210 = sphi 0, %s207
    %s211 = sphi 0, %s210
    %s227 = sphi 0, %s211
    %s233 = sphi 0, %s235
    %s236 = sphi 0, %s233
    %s237 = sphi 0, %s236
    %s253 = sphi 0, %s237
  $region4: #{pico_forward.4} parent=0 // loop_header_branch
    %18 = sbr.rel (%p16) target = $region8
  $region5: #{pico_forward.4} parent=0 // loop_body
    %s20 = ssub.s32 %s15, 1
    %s21 = ssub.s32 %s15, 2
    %s22 = sadd.s32 %s15, 1
    %s23 = ssub.s32 %s15, %s22
    %p24 = scmp.eq.s32.totalorder %s23, 0
    %s26 = sadd.s32 %s25, 1
    %s27 = scalar_select %p24, %s25, %s26
    %p30 = pneg %p24
    %p31 = scmp.eq.s32.totalorder %s15, 1
    %p32 = por %p30, %p31
    %p33 = scmp.ne.s32.totalorder %s25, %s28
    %p34 = scmp.eq.s32.totalorder %s15, 0
    %p35 = por %p33, %p34
    %p36 = scmp.ne.s32.totalorder %s25, %s28
    %p37 = scmp.eq.s32.totalorder %s20, 1
    %p38 = por %p36, %p37
    %p39 = scmp.ne.s32.totalorder %s28, %s29
    %p40 = scmp.eq.s32.totalorder %s20, 0
    %p41 = por %p39, %p40
    %p42 = scmp.ne.s32.totalorder %s28, %s29
    %p43 = scmp.eq.s32.totalorder %s21, 1
    %p44 = por %p42, %p43
    %p46 = scmp.ne.s32.totalorder %s29, %s45
    %p47 = scmp.eq.s32.totalorder %s21, 0
    %p48 = por %p46, %p47
    %s49 = ssub.s32 %s15, %s22
    %p50 = scmp.eq.s32.totalorder %s49, 0
    %s52 = sadd.s32 %s51, 1
    %s53 = scalar_select %p50, %s51, %s52
    %p56 = pneg %p50
    %p57 = scmp.eq.s32.totalorder %s15, 1
    %p58 = por %p56, %p57
    %p59 = scmp.ne.s32.totalorder %s51, %s54
    %p60 = scmp.eq.s32.totalorder %s15, 0
    %p61 = por %p59, %p60
    %p62 = scmp.ne.s32.totalorder %s51, %s54
    %p63 = scmp.eq.s32.totalorder %s20, 1
    %p64 = por %p62, %p63
    %p65 = scmp.ne.s32.totalorder %s54, %s55
    %p66 = scmp.eq.s32.totalorder %s20, 0
    %p67 = por %p65, %p66
    %p68 = scmp.ne.s32.totalorder %s54, %s55
    %p69 = scmp.eq.s32.totalorder %s21, 1
    %p70 = por %p68, %p69
    %p72 = scmp.ne.s32.totalorder %s55, %s71
    %p73 = scmp.eq.s32.totalorder %s21, 0
    %p74 = por %p72, %p73
    %s75 = ssub.s32 %s15, %s22
    %p76 = scmp.eq.s32.totalorder %s75, 0
    %s78 = sadd.s32 %s77, 1
    %s79 = scalar_select %p76, %s77, %s78
    %p82 = pneg %p76
    %p83 = scmp.eq.s32.totalorder %s15, 1
    %p84 = por %p82, %p83
    %p85 = scmp.ne.s32.totalorder %s77, %s80
    %p86 = scmp.eq.s32.totalorder %s15, 0
    %p87 = por %p85, %p86
    %p88 = scmp.ne.s32.totalorder %s77, %s80
    %p89 = scmp.eq.s32.totalorder %s20, 1
    %p90 = por %p88, %p89
    %p91 = scmp.ne.s32.totalorder %s80, %s81
    %p92 = scmp.eq.s32.totalorder %s20, 0
    %p93 = por %p91, %p92
    %p94 = scmp.ne.s32.totalorder %s80, %s81
    %p95 = scmp.eq.s32.totalorder %s21, 1
    %p96 = por %p94, %p95
    %p98 = scmp.ne.s32.totalorder %s81, %s97
    %p99 = scmp.eq.s32.totalorder %s21, 0
    %p100 = por %p98, %p99
    %s101 = ssub.s32 %s15, %s22
    %p102 = scmp.eq.s32.totalorder %s101, 0
    %s104 = sadd.s32 %s103, 1
    %s105 = scalar_select %p102, %s103, %s104
    %p108 = pneg %p102
    %p109 = scmp.eq.s32.totalorder %s15, 1
    %p110 = por %p108, %p109
    %p111 = scmp.ne.s32.totalorder %s103, %s106
    %p112 = scmp.eq.s32.totalorder %s15, 0
    %p113 = por %p111, %p112
    %p114 = scmp.ne.s32.totalorder %s103, %s106
    %p115 = scmp.eq.s32.totalorder %s20, 1
    %p116 = por %p114, %p115
    %p117 = scmp.ne.s32.totalorder %s106, %s107
    %p118 = scmp.eq.s32.totalorder %s20, 0
    %p119 = por %p117, %p118
    %p120 = scmp.ne.s32.totalorder %s106, %s107
    %p121 = scmp.eq.s32.totalorder %s21, 1
    %p122 = por %p120, %p121
    %p124 = scmp.ne.s32.totalorder %s107, %s123
    %p125 = scmp.eq.s32.totalorder %s21, 0
    %p126 = por %p124, %p125
    %s127 = ssub.s32 %s15, %s22
    %p128 = scmp.eq.s32.totalorder %s127, 0
    %s130 = sadd.s32 %s129, 1
    %s131 = scalar_select %p128, %s129, %s130
    %p134 = pneg %p128
    %p135 = scmp.eq.s32.totalorder %s15, 1
    %p136 = por %p134, %p135
    %p137 = scmp.ne.s32.totalorder %s129, %s132
    %p138 = scmp.eq.s32.totalorder %s15, 0
    %p139 = por %p137, %p138
    %p140 = scmp.ne.s32.totalorder %s129, %s132
    %p141 = scmp.eq.s32.totalorder %s20, 1
    %p142 = por %p140, %p141
    %p143 = scmp.ne.s32.totalorder %s132, %s133
    %p144 = scmp.eq.s32.totalorder %s20, 0
    %p145 = por %p143, %p144
    %p146 = scmp.ne.s32.totalorder %s132, %s133
    %p147 = scmp.eq.s32.totalorder %s21, 1
    %p148 = por %p146, %p147
    %p150 = scmp.ne.s32.totalorder %s133, %s149
    %p151 = scmp.eq.s32.totalorder %s21, 0
    %p152 = por %p150, %p151
    %s153 = ssub.s32 %s15, %s22
    %p154 = scmp.eq.s32.totalorder %s153, 0
    %s156 = sadd.s32 %s155, 1
    %s157 = scalar_select %p154, %s155, %s156
    %p160 = pneg %p154
    %p161 = scmp.eq.s32.totalorder %s15, 1
    %p162 = por %p160, %p161
    %p163 = scmp.ne.s32.totalorder %s155, %s158
    %p164 = scmp.eq.s32.totalorder %s15, 0
    %p165 = por %p163, %p164
    %p166 = scmp.ne.s32.totalorder %s155, %s158
    %p167 = scmp.eq.s32.totalorder %s20, 1
    %p168 = por %p166, %p167
    %p169 = scmp.ne.s32.totalorder %s158, %s159
    %p170 = scmp.eq.s32.totalorder %s20, 0
    %p171 = por %p169, %p170
    %p172 = scmp.ne.s32.totalorder %s158, %s159
    %p173 = scmp.eq.s32.totalorder %s21, 1
    %p174 = por %p172, %p173
    %p176 = scmp.ne.s32.totalorder %s159, %s175
    %p177 = scmp.eq.s32.totalorder %s21, 0
    %p178 = por %p176, %p177
    %s179 = ssub.s32 %s15, %s22
    %p180 = scmp.eq.s32.totalorder %s179, 0
    %s182 = sadd.s32 %s181, 1
    %s183 = scalar_select %p180, %s181, %s182
    %p186 = pneg %p180
    %p187 = scmp.eq.s32.totalorder %s15, 1
    %p188 = por %p186, %p187
    %p189 = scmp.ne.s32.totalorder %s181, %s184
    %p190 = scmp.eq.s32.totalorder %s15, 0
    %p191 = por %p189, %p190
    %p192 = scmp.ne.s32.totalorder %s181, %s184
    %p193 = scmp.eq.s32.totalorder %s20, 1
    %p194 = por %p192, %p193
    %p195 = scmp.ne.s32.totalorder %s184, %s185
    %p196 = scmp.eq.s32.totalorder %s20, 0
    %p197 = por %p195, %p196
    %p198 = scmp.ne.s32.totalorder %s184, %s185
    %p199 = scmp.eq.s32.totalorder %s21, 1
    %p200 = por %p198, %p199
    %p202 = scmp.ne.s32.totalorder %s185, %s201
    %p203 = scmp.eq.s32.totalorder %s21, 0
    %p204 = por %p202, %p203
    %s205 = ssub.s32 %s15, %s22
    %p206 = scmp.eq.s32.totalorder %s205, 0
    %s208 = sadd.s32 %s207, 1
    %s209 = scalar_select %p206, %s207, %s208
    %p212 = pneg %p206
    %p213 = scmp.eq.s32.totalorder %s15, 1
    %p214 = por %p212, %p213
    %p215 = scmp.ne.s32.totalorder %s207, %s210
    %p216 = scmp.eq.s32.totalorder %s15, 0
    %p217 = por %p215, %p216
    %p218 = scmp.ne.s32.totalorder %s207, %s210
    %p219 = scmp.eq.s32.totalorder %s20, 1
    %p220 = por %p218, %p219
    %p221 = scmp.ne.s32.totalorder %s210, %s211
    %p222 = scmp.eq.s32.totalorder %s20, 0
    %p223 = por %p221, %p222
    %p224 = scmp.ne.s32.totalorder %s210, %s211
    %p225 = scmp.eq.s32.totalorder %s21, 1
    %p226 = por %p224, %p225
    %p228 = scmp.ne.s32.totalorder %s211, %s227
    %p229 = scmp.eq.s32.totalorder %s21, 0
    %p230 = por %p228, %p229
    %s231 = ssub.s32 %s15, %s22
    %p232 = scmp.eq.s32.totalorder %s231, 0
    %s234 = sadd.s32 %s233, 1
    %s235 = scalar_select %p232, %s233, %s234
    %p238 = pneg %p232
    %p239 = scmp.eq.s32.totalorder %s15, 1
    %p240 = por %p238, %p239
    %p241 = scmp.ne.s32.totalorder %s233, %s236
    %p242 = scmp.eq.s32.totalorder %s15, 0
    %p243 = por %p241, %p242
    %p244 = scmp.ne.s32.totalorder %s233, %s236
    %p245 = scmp.eq.s32.totalorder %s20, 1
    %p246 = por %p244, %p245
    %p247 = scmp.ne.s32.totalorder %s236, %s237
    %p248 = scmp.eq.s32.totalorder %s20, 0
    %p249 = por %p247, %p248
    %p250 = scmp.ne.s32.totalorder %s236, %s237
    %p251 = scmp.eq.s32.totalorder %s21, 1
    %p252 = por %p250, %p251
    %p254 = scmp.ne.s32.totalorder %s237, %s253
    %p255 = scmp.eq.s32.totalorder %s21, 0
    %p256 = por %p254, %p255
    %p257 = scmp.le.s32.totalorder 1, %s15
    %p258 = scmp.lt.s32.totalorder %s15, 3
    %p259 = pnand %p257, %p258
    %p260 = pneg %p259
    // Predicated region
    $region9: #{pico_forward.4} parent=5 // pred_check
      _
    $region10: #{pico_forward.4} parent=5 // pred_check_branch
      %262 = sbr.rel (%p259) target = $region12
    $region11: #{pico_forward.4} parent=5 // pred_region
      %s263 = ssub.s32 %s15, 1
    $region12: #{pico_forward.4} parent=5 // pred_fallthru
      _
    %p264 = scmp.lt.s32.totalorder %s15, 2
    // Predicated region
    $region13: #{pico_forward.4} parent=5 // pred_check
      %p265 = pneg %p264
    $region14: #{pico_forward.4} parent=5 // pred_check_branch
      %267 = sbr.rel (%p265) target = $region16
    $region15: #{pico_forward.4} parent=5 // pred_region
      // Predicated region
      $region17: #{pico_forward.4} parent=15 // pred_check
        %p268 = pneg %p35
      $region18: #{pico_forward.4} parent=15 // pred_check_branch
        %270 = sbr.rel (%p268) target = $region20
      $region19: #{pico_forward.4} parent=15 // pred_region
        %p271 = scmp.lt.s32.totalorder %s15, 1
        %s272 = scalar_select %p271, %s15, 1
        %s273 = smul.addr %s272, 128
        %s274 = smul.addr %s273, 8
        %s275 = scalar_lea.vmem %s0, %s274
      $region20: #{pico_forward.4} parent=15 // pred_fallthru
        _
      // Predicated region
      $region21: #{pico_forward.4} parent=15 // pred_check
        %p276 = pneg %p61
      $region22: #{pico_forward.4} parent=15 // pred_check_branch
        %278 = sbr.rel (%p276) target = $region24
      $region23: #{pico_forward.4} parent=15 // pred_region
        %p279 = scmp.lt.s32.totalorder %s15, 1
        %s280 = scalar_select %p279, %s15, 1
        %s281 = smul.addr %s280, 16
        %s282 = smul.addr %s281, 8
        %s283 = scalar_lea.vmem %s1, %s282
      $region24: #{pico_forward.4} parent=15 // pred_fallthru
        _
      // Predicated region
      $region25: #{pico_forward.4} parent=15 // pred_check
        %p284 = pneg %p87
      $region26: #{pico_forward.4} parent=15 // pred_check_branch
        %286 = sbr.rel (%p284) target = $region28
      $region27: #{pico_forward.4} parent=15 // pred_region
        %p287 = scmp.lt.s32.totalorder %s15, 1
        %s288 = scalar_select %p287, %s15, 1
        %s289 = scalar_lea.vmem %s2, %s288
      $region28: #{pico_forward.4} parent=15 // pred_fallthru
        _
      // Predicated region
      $region29: #{pico_forward.4} parent=15 // pred_check
        %p290 = pneg %p113
      $region30: #{pico_forward.4} parent=15 // pred_check_branch
        %292 = sbr.rel (%p290) target = $region32
      $region31: #{pico_forward.4} parent=15 // pred_region
        %p293 = scmp.lt.s32.totalorder %s15, 1
        %s294 = scalar_select %p293, %s15, 1
        %s295 = smul.addr %s294, 4
        %s296 = smul.addr %s295, 8
        %s297 = scalar_lea.vmem %s3, %s296
      $region32: #{pico_forward.4} parent=15 // pred_fallthru
        _
      // Predicated region
      $region33: #{pico_forward.4} parent=15 // pred_check
        %p298 = pneg %p139
      $region34: #{pico_forward.4} parent=15 // pred_check_branch
        %300 = sbr.rel (%p298) target = $region36
      $region35: #{pico_forward.4} parent=15 // pred_region
        %p301 = scmp.lt.s32.totalorder %s15, 1
        %s302 = scalar_select %p301, %s15, 1
        %s303 = scalar_lea.vmem %s4, %s302
      $region36: #{pico_forward.4} parent=15 // pred_fallthru
        _
      // Predicated region
      $region37: #{pico_forward.4} parent=15 // pred_check
        %p304 = pneg %p165
      $region38: #{pico_forward.4} parent=15 // pred_check_branch
        %306 = sbr.rel (%p304) target = $region40
      $region39: #{pico_forward.4} parent=15 // pred_region
        %p307 = scmp.lt.s32.totalorder %s15, 1
        %s308 = scalar_select %p307, %s15, 1
        %s309 = smul.addr %s308, 4
        %s310 = smul.addr %s309, 8
        %s311 = scalar_lea.vmem %s5, %s310
      $region40: #{pico_forward.4} parent=15 // pred_fallthru
        _
      // Predicated region
      $region41: #{pico_forward.4} parent=15 // pred_check
        %p312 = pneg %p191
      $region42: #{pico_forward.4} parent=15 // pred_check_branch
        %314 = sbr.rel (%p312) target = $region44
      $region43: #{pico_forward.4} parent=15 // pred_region
        %p315 = scmp.lt.s32.totalorder %s15, 1
        %s316 = scalar_select %p315, %s15, 1
        %s317 = scalar_lea.vmem %s6, %s316
      $region44: #{pico_forward.4} parent=15 // pred_fallthru
        _
    $region16: #{pico_forward.4} parent=5 // pred_fallthru
      _
    %p318 = scmp.le.s32.totalorder 1, %s15
    %p319 = scmp.lt.s32.totalorder %s15, 3
    %p320 = pnand %p318, %p319
    %p321 = pneg %p320
    // Predicated region
    $region45: #{pico_forward.4} parent=5 // pred_check
      _
    $region46: #{pico_forward.4} parent=5 // pred_check_branch
      %323 = sbr.rel (%p320) target = $region48
    $region47: #{pico_forward.4} parent=5 // pred_region
      %s324 = ssub.s32 %s15, 1
      %p325 = scmp.lt.s32.totalorder %s20, 1
      %s326 = scalar_select %p325, %s20, 1
      %s327 = smul.addr %s326, 128
      %s328 = smul.addr %s327, 8
      %s329 = scalar_lea.vmem %s0, %s328
      %p330 = pneg %p41
      %p331 = pneg %p38
      %p332 = scmp.lt.s32.totalorder %s20, 1
      %s333 = scalar_select %p332, %s20, 1
      %s334 = smul.addr %s333, 16
      %s335 = smul.addr %s334, 8
      %s336 = scalar_lea.vmem %s1, %s335
      %p337 = pneg %p67
      %p338 = pneg %p64
      %p339 = scmp.lt.s32.totalorder %s20, 1
      %s340 = scalar_select %p339, %s20, 1
      %s341 = scalar_lea.vmem %s2, %s340
      %p342 = pneg %p93
      %p343 = pneg %p90
      %p344 = scmp.lt.s32.totalorder %s20, 1
      %s345 = scalar_select %p344, %s20, 1
      %s346 = smul.addr %s345, 4
      %s347 = smul.addr %s346, 8
      %s348 = scalar_lea.vmem %s3, %s347
      %p349 = pneg %p119
      %p350 = pneg %p116
      %p351 = scmp.lt.s32.totalorder %s20, 1
      %s352 = scalar_select %p351, %s20, 1
      %s353 = scalar_lea.vmem %s4, %s352
      %p354 = pneg %p145
      %p355 = pneg %p142
      %p356 = scmp.lt.s32.totalorder %s20, 1
      %s357 = scalar_select %p356, %s20, 1
      %s358 = smul.addr %s357, 4
      %s359 = smul.addr %s358, 8
      %s360 = scalar_lea.vmem %s5, %s359
      %p361 = pneg %p171
      %p362 = pneg %p168
      %p363 = scmp.lt.s32.totalorder %s20, 1
      %s364 = scalar_select %p363, %s20, 1
      %s365 = scalar_lea.vmem %s6, %s364
      %p366 = pneg %p197
      %p367 = pneg %p194
      %p368 = pneg %p223
      %p369 = pneg %p220
      %p370 = scmp.lt.s32.totalorder %s20, 1
      %s371 = scalar_select %p370, %s20, 1
      %s372 = smul.addr %s371, 4
      %s373 = scalar_lea.vmem %s7, %s372
      %p374 = pneg %p249
      %p375 = pneg %p246
      %p376 = scmp.lt.s32.totalorder %s20, 1
      %s377 = scalar_select %p376, %s20, 1
      %s378 = smul.addr %s377, 4
      %s379 = scalar_lea.vmem %s8, %s378
      %p380 = scmp.lt.s32.totalorder %s20, 1
      %s381 = scalar_select %p380, %s20, 1
      %s382 = smul.addr %s381, 128
      %s383 = smul.addr %s382, 8
      %s384 = scalar_lea.vmem %s0, %s383
      %p385 = scmp.lt.s32.totalorder %s20, 1
      %s386 = scalar_select %p385, %s20, 1
      %s387 = smul.addr %s386, 16
      %s388 = smul.addr %s387, 8
      %s389 = scalar_lea.vmem %s1, %s388
      %p390 = scmp.lt.s32.totalorder %s20, 1
      %s391 = scalar_select %p390, %s20, 1
      %s392 = scalar_lea.vmem %s2, %s391
      %p393 = scmp.lt.s32.totalorder %s20, 1
      %s394 = scalar_select %p393, %s20, 1
      %s395 = smul.addr %s394, 4
      %s396 = smul.addr %s395, 8
      %s397 = scalar_lea.vmem %s3, %s396
      %p398 = scmp.lt.s32.totalorder %s20, 1
      %s399 = scalar_select %p398, %s20, 1
      %s400 = scalar_lea.vmem %s4, %s399
      %p401 = scmp.lt.s32.totalorder %s20, 1
      %s402 = scalar_select %p401, %s20, 1
      %s403 = smul.addr %s402, 4
      %s404 = smul.addr %s403, 8
      %s405 = scalar_lea.vmem %s5, %s404
      %p406 = scmp.lt.s32.totalorder %s20, 1
      %s407 = scalar_select %p406, %s20, 1
      %s408 = scalar_lea.vmem %s6, %s407
      %p409 = scmp.lt.s32.totalorder %s20, 1
      %s410 = scalar_select %p409, %s20, 1
      %s411 = smul.addr %s410, 4
      %s412 = scalar_lea.vmem %s7, %s411
      %p413 = scmp.lt.s32.totalorder %s20, 1
      %s414 = scalar_select %p413, %s20, 1
      %s415 = smul.addr %s414, 4
      %s416 = scalar_lea.vmem %s8, %s415
      %v417 = vld [vmem:[%s384] sm:$0xff]
      %v418 = vld [vmem:[%s384 + $0x8] sm:$0xff]
      %v419 = vld [vmem:[%s384 + $0x10] sm:$0xff]
      %v420 = vld [vmem:[%s384 + $0x18] sm:$0xff]
      %v421 = vld [vmem:[%s384 + $0x20] sm:$0xff]
      %v422 = vld [vmem:[%s384 + $0x28] sm:$0xff]
      %v423 = vld [vmem:[%s384 + $0x30] sm:$0xff]
      %v424 = vld [vmem:[%s384 + $0x38] sm:$0xff]
      %v425 = vld [vmem:[%s384 + $0x40] sm:$0xff]
      %v426 = vld [vmem:[%s384 + $0x48] sm:$0xff]
      %v427 = vld [vmem:[%s384 + $0x50] sm:$0xff]
      %v428 = vld [vmem:[%s384 + $0x58] sm:$0xff]
      %v429 = vld [vmem:[%s384 + $0x60] sm:$0xff]
      %v430 = vld [vmem:[%s384 + $0x68] sm:$0xff]
      %v431 = vld [vmem:[%s384 + $0x70] sm:$0xff]
      %v432 = vld [vmem:[%s384 + $0x78] sm:$0xff]
      %v433 = vld [vmem:[%s384 + $0x80] sm:$0xff]
      %v434 = vld [vmem:[%s384 + $0x88] sm:$0xff]
      %v435 = vld [vmem:[%s384 + $0x90] sm:$0xff]
      %v436 = vld [vmem:[%s384 + $0x98] sm:$0xff]
      %v437 = vld [vmem:[%s384 + $0xa0] sm:$0xff]
      %v438 = vld [vmem:[%s384 + $0xa8] sm:$0xff]
      %v439 = vld [vmem:[%s384 + $0xb0] sm:$0xff]
      %v440 = vld [vmem:[%s384 + $0xb8] sm:$0xff]
      %v441 = vld [vmem:[%s384 + $0xc0] sm:$0xff]
      %v442 = vld [vmem:[%s384 + $0xc8] sm:$0xff]
      %v443 = vld [vmem:[%s384 + $0xd0] sm:$0xff]
      %v444 = vld [vmem:[%s384 + $0xd8] sm:$0xff]
      %v445 = vld [vmem:[%s384 + $0xe0] sm:$0xff]
      %v446 = vld [vmem:[%s384 + $0xe8] sm:$0xff]
      %v447 = vld [vmem:[%s384 + $0xf0] sm:$0xff]
      %v448 = vld [vmem:[%s384 + $0xf8] sm:$0xff]
      %v449 = vld [vmem:[%s384 + $0x100] sm:$0xff]
      %v450 = vld [vmem:[%s384 + $0x108] sm:$0xff]
      %v451 = vld [vmem:[%s384 + $0x110] sm:$0xff]
      %v452 = vld [vmem:[%s384 + $0x118] sm:$0xff]
      %v453 = vld [vmem:[%s384 + $0x120] sm:$0xff]
      %v454 = vld [vmem:[%s384 + $0x128] sm:$0xff]
      %v455 = vld [vmem:[%s384 + $0x130] sm:$0xff]
      %v456 = vld [vmem:[%s384 + $0x138] sm:$0xff]
      %v457 = vld [vmem:[%s384 + $0x140] sm:$0xff]
      %v458 = vld [vmem:[%s384 + $0x148] sm:$0xff]
      %v459 = vld [vmem:[%s384 + $0x150] sm:$0xff]
      %v460 = vld [vmem:[%s384 + $0x158] sm:$0xff]
      %v461 = vld [vmem:[%s384 + $0x160] sm:$0xff]
      %v462 = vld [vmem:[%s384 + $0x168] sm:$0xff]
      %v463 = vld [vmem:[%s384 + $0x170] sm:$0xff]
      %v464 = vld [vmem:[%s384 + $0x178] sm:$0xff]
      %v465 = vld [vmem:[%s384 + $0x180] sm:$0xff]
      %v466 = vld [vmem:[%s384 + $0x188] sm:$0xff]
      %v467 = vld [vmem:[%s384 + $0x190] sm:$0xff]
      %v468 = vld [vmem:[%s384 + $0x198] sm:$0xff]
      %v469 = vld [vmem:[%s384 + $0x1a0] sm:$0xff]
      %v470 = vld [vmem:[%s384 + $0x1a8] sm:$0xff]
      %v471 = vld [vmem:[%s384 + $0x1b0] sm:$0xff]
      %v472 = vld [vmem:[%s384 + $0x1b8] sm:$0xff]
      %v473 = vld [vmem:[%s384 + $0x1c0] sm:$0xff]
      %v474 = vld [vmem:[%s384 + $0x1c8] sm:$0xff]
      %v475 = vld [vmem:[%s384 + $0x1d0] sm:$0xff]
      %v476 = vld [vmem:[%s384 + $0x1d8] sm:$0xff]
      %v477 = vld [vmem:[%s384 + $0x1e0] sm:$0xff]
      %v478 = vld [vmem:[%s384 + $0x1e8] sm:$0xff]
      %v479 = vld [vmem:[%s384 + $0x1f0] sm:$0xff]
      %v480 = vld [vmem:[%s384 + $0x1f8] sm:$0xff]
      %v481 = vld [vmem:[%s384 + $0x200] sm:$0xff]
      %v482 = vld [vmem:[%s384 + $0x208] sm:$0xff]
      %v483 = vld [vmem:[%s384 + $0x210] sm:$0xff]
      %v484 = vld [vmem:[%s384 + $0x218] sm:$0xff]
      %v485 = vld [vmem:[%s384 + $0x220] sm:$0xff]
      %v486 = vld [vmem:[%s384 + $0x228] sm:$0xff]
      %v487 = vld [vmem:[%s384 + $0x230] sm:$0xff]
      %v488 = vld [vmem:[%s384 + $0x238] sm:$0xff]
      %v489 = vld [vmem:[%s384 + $0x240] sm:$0xff]
      %v490 = vld [vmem:[%s384 + $0x248] sm:$0xff]
      %v491 = vld [vmem:[%s384 + $0x250] sm:$0xff]
      %v492 = vld [vmem:[%s384 + $0x258] sm:$0xff]
      %v493 = vld [vmem:[%s384 + $0x260] sm:$0xff]
      %v494 = vld [vmem:[%s384 + $0x268] sm:$0xff]
      %v495 = vld [vmem:[%s384 + $0x270] sm:$0xff]
      %v496 = vld [vmem:[%s384 + $0x278] sm:$0xff]
      %v497 = vld [vmem:[%s384 + $0x280] sm:$0xff]
      %v498 = vld [vmem:[%s384 + $0x288] sm:$0xff]
      %v499 = vld [vmem:[%s384 + $0x290] sm:$0xff]
      %v500 = vld [vmem:[%s384 + $0x298] sm:$0xff]
      %v501 = vld [vmem:[%s384 + $0x2a0] sm:$0xff]
      %v502 = vld [vmem:[%s384 + $0x2a8] sm:$0xff]
      %v503 = vld [vmem:[%s384 + $0x2b0] sm:$0xff]
      %v504 = vld [vmem:[%s384 + $0x2b8] sm:$0xff]
      %v505 = vld [vmem:[%s384 + $0x2c0] sm:$0xff]
      %v506 = vld [vmem:[%s384 + $0x2c8] sm:$0xff]
      %v507 = vld [vmem:[%s384 + $0x2d0] sm:$0xff]
      %v508 = vld [vmem:[%s384 + $0x2d8] sm:$0xff]
      %v509 = vld [vmem:[%s384 + $0x2e0] sm:$0xff]
      %v510 = vld [vmem:[%s384 + $0x2e8] sm:$0xff]
      %v511 = vld [vmem:[%s384 + $0x2f0] sm:$0xff]
      %v512 = vld [vmem:[%s384 + $0x2f8] sm:$0xff]
      %v513 = vld [vmem:[%s384 + $0x300] sm:$0xff]
      %v514 = vld [vmem:[%s384 + $0x308] sm:$0xff]
      %v515 = vld [vmem:[%s384 + $0x310] sm:$0xff]
      %v516 = vld [vmem:[%s384 + $0x318] sm:$0xff]
      %v517 = vld [vmem:[%s384 + $0x320] sm:$0xff]
      %v518 = vld [vmem:[%s384 + $0x328] sm:$0xff]
      %v519 = vld [vmem:[%s384 + $0x330] sm:$0xff]
      %v520 = vld [vmem:[%s384 + $0x338] sm:$0xff]
      %v521 = vld [vmem:[%s384 + $0x340] sm:$0xff]
      %v522 = vld [vmem:[%s384 + $0x348] sm:$0xff]
      %v523 = vld [vmem:[%s384 + $0x350] sm:$0xff]
      %v524 = vld [vmem:[%s384 + $0x358] sm:$0xff]
      %v525 = vld [vmem:[%s384 + $0x360] sm:$0xff]
      %v526 = vld [vmem:[%s384 + $0x368] sm:$0xff]
      %v527 = vld [vmem:[%s384 + $0x370] sm:$0xff]
      %v528 = vld [vmem:[%s384 + $0x378] sm:$0xff]
      %v529 = vld [vmem:[%s384 + $0x380] sm:$0xff]
      %v530 = vld [vmem:[%s384 + $0x388] sm:$0xff]
      %v531 = vld [vmem:[%s384 + $0x390] sm:$0xff]
      %v532 = vld [vmem:[%s384 + $0x398] sm:$0xff]
      %v533 = vld [vmem:[%s384 + $0x3a0] sm:$0xff]
      %v534 = vld [vmem:[%s384 + $0x3a8] sm:$0xff]
      %v535 = vld [vmem:[%s384 + $0x3b0] sm:$0xff]
      %v536 = vld [vmem:[%s384 + $0x3b8] sm:$0xff]
      %v537 = vld [vmem:[%s384 + $0x3c0] sm:$0xff]
      %v538 = vld [vmem:[%s384 + $0x3c8] sm:$0xff]
      %v539 = vld [vmem:[%s384 + $0x3d0] sm:$0xff]
      %v540 = vld [vmem:[%s384 + $0x3d8] sm:$0xff]
      %v541 = vld [vmem:[%s384 + $0x3e0] sm:$0xff]
      %v542 = vld [vmem:[%s384 + $0x3e8] sm:$0xff]
      %v543 = vld [vmem:[%s384 + $0x3f0] sm:$0xff]
      %v544 = vld [vmem:[%s384 + $0x3f8] sm:$0xff]
      %v545 = vld [vmem:[%s389] sm:$0xff]
      %v546 = vld [vmem:[%s389 + $0x8] sm:$0xff]
      %v547 = vld [vmem:[%s389 + $0x10] sm:$0xff]
      %v548 = vld [vmem:[%s389 + $0x18] sm:$0xff]
      %v549 = vld [vmem:[%s389 + $0x20] sm:$0xff]
      %v550 = vld [vmem:[%s389 + $0x28] sm:$0xff]
      %v551 = vld [vmem:[%s389 + $0x30] sm:$0xff]
      %v552 = vld [vmem:[%s389 + $0x38] sm:$0xff]
      %v553 = vld [vmem:[%s389 + $0x40] sm:$0xff]
      %v554 = vld [vmem:[%s389 + $0x48] sm:$0xff]
      %v555 = vld [vmem:[%s389 + $0x50] sm:$0xff]
      %v556 = vld [vmem:[%s389 + $0x58] sm:$0xff]
      %v557 = vld [vmem:[%s389 + $0x60] sm:$0xff]
      %v558 = vld [vmem:[%s389 + $0x68] sm:$0xff]
      %v559 = vld [vmem:[%s389 + $0x70] sm:$0xff]
      %v560 = vld [vmem:[%s389 + $0x78] sm:$0xff]
      %v561 = vld [vmem:[%s392] sm:$0x1]
      %v563 = vlaneseq
      %v564 = vshrl.u32 %v563, 7
      %v565 = vsub.s32 0, %v564
      %v566 = vrot.slane %v561, %v565
      %568 = vmatprep.subr.mxu0 0.0
      %569 = vmatpush1.msra.mxu0 %v545
      %570 = vmatprep.subr.mxu0 0.0
      %571 = vmatpush1.msra.mxu0 %v546
      %572 = vmatprep.subr.mxu0 0.0
      %573 = vmatpush1.msra.mxu0 %v547
      %574 = vmatprep.subr.mxu0 0.0
      %575 = vmatpush1.msra.mxu0 %v548
      %576 = vmatprep.subr.mxu0 0.0
      %577 = vmatpush1.msra.mxu0 %v549
      %578 = vmatprep.subr.mxu0 0.0
      %579 = vmatpush1.msra.mxu0 %v550
      %580 = vmatprep.subr.mxu0 0.0
      %581 = vmatpush1.msra.mxu0 %v551
      %582 = vmatprep.subr.mxu0 0.0
      %583 = vmatpush1.msra.mxu0 %v552
      %584 = vmatprep.subr.mxu0 0.0
      %585 = vmatpush1.msra.mxu0 %v553
      %586 = vmatprep.subr.mxu0 0.0
      %587 = vmatpush1.msra.mxu0 %v554
      %588 = vmatprep.subr.mxu0 0.0
      %589 = vmatpush1.msra.mxu0 %v555
      %590 = vmatprep.subr.mxu0 0.0
      %591 = vmatpush1.msra.mxu0 %v556
      %592 = vmatprep.subr.mxu0 0.0
      %593 = vmatpush1.msra.mxu0 %v557
      %594 = vmatprep.subr.mxu0 0.0
      %595 = vmatpush1.msra.mxu0 %v558
      %596 = vmatprep.subr.mxu0 0.0
      %597 = vmatpush1.msra.mxu0 %v559
      %598 = vmatprep.subr.mxu0 0.0
      %599 = vmatpush1.msra.mxu0 %v560
      %600 = vmatprep.subr.mxu0 0.0
      %601 = vmatpush1.msra.mxu0 0.0
      %602 = vmatprep.subr.mxu0 0.0
      %603 = vmatpush1.msra.mxu0 0.0
      %604 = vmatprep.subr.mxu0 0.0
      %605 = vmatpush1.msra.mxu0 0.0
      %606 = vmatprep.subr.mxu0 0.0
      %607 = vmatpush1.msra.mxu0 0.0
      %608 = vmatprep.subr.mxu0 0.0
      %609 = vmatpush1.msra.mxu0 0.0
      %610 = vmatprep.subr.mxu0 0.0
      %611 = vmatpush1.msra.mxu0 0.0
      %612 = vmatprep.subr.mxu0 0.0
      %613 = vmatpush1.msra.mxu0 0.0
      %614 = vmatprep.subr.mxu0 0.0
      %615 = vmatpush1.msra.mxu0 0.0
      %616 = vmatprep.subr.mxu0 0.0
      %617 = vmatpush1.msra.mxu0 0.0
      %618 = vmatprep.subr.mxu0 0.0
      %619 = vmatpush1.msra.mxu0 0.0
      %620 = vmatprep.subr.mxu0 0.0
      %621 = vmatpush1.msra.mxu0 0.0
      %622 = vmatprep.subr.mxu0 0.0
      %623 = vmatpush1.msra.mxu0 0.0
      %624 = vmatprep.subr.mxu0 0.0
      %625 = vmatpush1.msra.mxu0 0.0
      %626 = vmatprep.subr.mxu0 0.0
      %627 = vmatpush1.msra.mxu0 0.0
      %628 = vmatprep.subr.mxu0 0.0
      %629 = vmatpush1.msra.mxu0 0.0
      %630 = vmatprep.subr.mxu0 0.0
      %631 = vmatpush1.msra.mxu0 0.0
      %632 = vmatprep.mubr.f32.mxu0 0.0
      %633 = vmatmul.mubr.f32.gmra.mrb[0].mxu0 %v417
      %v634 = vpop.f32.mrb[0].mxu0
      %v635 = vadd.f32 %v566, %v634
      %v636 = vpop.f32.mrb[0].mxu0
      %637 = vmatprep.mubr.f32.mxu0 0.0
      %638 = vmatmul.mubr.f32.gmra.mrb[0].mxu0 %v418
      %v639 = vpop.f32.mrb[0].mxu0
      %v640 = vadd.f32 %v566, %v639
      %v641 = vpop.f32.mrb[0].mxu0
      %642 = vmatprep.mubr.f32.mxu0 0.0
      %643 = vmatmul.mubr.f32.gmra.mrb[0].mxu0 %v419
      %v644 = vpop.f32.mrb[0].mxu0
      %v645 = vadd.f32 %v566, %v644
      %v646 = vpop.f32.mrb[0].mxu0
      %647 = vmatprep.mubr.f32.mxu0 0.0
      %648 = vmatmul.mubr.f32.gmra.mrb[0].mxu0 %v420
      %v649 = vpop.f32.mrb[0].mxu0
      %v650 = vadd.f32 %v566, %v649
      %v651 = vpop.f32.mrb[0].mxu0
      %652 = vmatprep.mubr.f32.mxu0 0.0
      %653 = vmatmul.mubr.f32.gmra.mrb[0].mxu0 %v421
      %v654 = vpop.f32.mrb[0].mxu0
      %v655 = vadd.f32 %v566, %v654
      %v656 = vpop.f32.mrb[0].mxu0
      %657 = vmatprep.mubr.f32.mxu0 0.0
      %658 = vmatmul.mubr.f32.gmra.mrb[0].mxu0 %v422
      %v659 = vpop.f32.mrb[0].mxu0
      %v660 = vadd.f32 %v566, %v659
      %v661 = vpop.f32.mrb[0].mxu0
      %662 = vmatprep.mubr.f32.mxu0 0.0
      %663 = vmatmul.mubr.f32.gmra.mrb[0].mxu0 %v423
      %v664 = vpop.f32.mrb[0].mxu0
      %v665 = vadd.f32 %v566, %v664
      %v666 = vpop.f32.mrb[0].mxu0
      %667 = vmatprep.mubr.f32.mxu0 0.0
      %668 = vmatmul.mubr.f32.gmra.mrb[0].mxu0 %v424
      %v669 = vpop.f32.mrb[0].mxu0
      %v670 = vadd.f32 %v566, %v669
      %v671 = vpop.f32.mrb[0].mxu0
      %672 = vmatprep.mubr.f32.mxu0 0.0
      %673 = vmatmul.mubr.f32.gmra.mrb[0].mxu0 %v425
      %v674 = vpop.f32.mrb[0].mxu0
      %v675 = vadd.f32 %v566, %v674
      %v676 = vpop.f32.mrb[0].mxu0
      %677 = vmatprep.mubr.f32.mxu0 0.0
      %678 = vmatmul.mubr.f32.gmra.mrb[0].mxu0 %v426
      %v679 = vpop.f32.mrb[0].mxu0
      %v680 = vadd.f32 %v566, %v679
      %v681 = vpop.f32.mrb[0].mxu0
      %682 = vmatprep.mubr.f32.mxu0 0.0
      %683 = vmatmul.mubr.f32.gmra.mrb[0].mxu0 %v427
      %v684 = vpop.f32.mrb[0].mxu0
      %v685 = vadd.f32 %v566, %v684
      %v686 = vpop.f32.mrb[0].mxu0
      %687 = vmatprep.mubr.f32.mxu0 0.0
      %688 = vmatmul.mubr.f32.gmra.mrb[0].mxu0 %v428
      %v689 = vpop.f32.mrb[0].mxu0
      %v690 = vadd.f32 %v566, %v689
      %v691 = vpop.f32.mrb[0].mxu0
      %692 = vmatprep.mubr.f32.mxu0 0.0
      %693 = vmatmul.mubr.f32.gmra.mrb[0].mxu0 %v429
      %v694 = vpop.f32.mrb[0].mxu0
      %v695 = vadd.f32 %v566, %v694
      %v696 = vpop.f32.mrb[0].mxu0
      %697 = vmatprep.mubr.f32.mxu0 0.0
      %698 = vmatmul.mubr.f32.gmra.mrb[0].mxu0 %v430
      %v699 = vpop.f32.mrb[0].mxu0
      %v700 = vadd.f32 %v566, %v699
      %v701 = vpop.f32.mrb[0].mxu0
      %702 = vmatprep.mubr.f32.mxu0 0.0
      %703 = vmatmul.mubr.f32.gmra.mrb[0].mxu0 %v431
      %v704 = vpop.f32.mrb[0].mxu0
      %v705 = vadd.f32 %v566, %v704
      %v706 = vpop.f32.mrb[0].mxu0
      %707 = vmatprep.mubr.f32.mxu0 0.0
      %708 = vmatmul.mubr.f32.gmra.mrb[0].mxu0 %v432
      %v709 = vpop.f32.mrb[0].mxu0
      %v710 = vadd.f32 %v566, %v709
      %v711 = vpop.f32.mrb[0].mxu0
      %712 = vmatprep.mubr.f32.mxu0 0.0
      %713 = vmatmul.mubr.f32.gmra.mrb[0].mxu0 %v433
      %v714 = vpop.f32.mrb[0].mxu0
      %v715 = vadd.f32 %v566, %v714
      %v716 = vpop.f32.mrb[0].mxu0
      %717 = vmatprep.mubr.f32.mxu0 0.0
      %718 = vmatmul.mubr.f32.gmra.mrb[0].mxu0 %v434
      %v719 = vpop.f32.mrb[0].mxu0
      %v720 = vadd.f32 %v566, %v719
      %v721 = vpop.f32.mrb[0].mxu0
      %722 = vmatprep.mubr.f32.mxu0 0.0
      %723 = vmatmul.mubr.f32.gmra.mrb[0].mxu0 %v435
      %v724 = vpop.f32.mrb[0].mxu0
      %v725 = vadd.f32 %v566, %v724
      %v726 = vpop.f32.mrb[0].mxu0
      %727 = vmatprep.mubr.f32.mxu0 0.0
      %728 = vmatmul.mubr.f32.gmra.mrb[0].mxu0 %v436
      %v729 = vpop.f32.mrb[0].mxu0
      %v730 = vadd.f32 %v566, %v729
      %v731 = vpop.f32.mrb[0].mxu0
      %732 = vmatprep.mubr.f32.mxu0 0.0
      %733 = vmatmul.mubr.f32.gmra.mrb[0].mxu0 %v437
      %v734 = vpop.f32.mrb[0].mxu0
      %v735 = vadd.f32 %v566, %v734
      %v736 = vpop.f32.mrb[0].mxu0
      %737 = vmatprep.mubr.f32.mxu0 0.0
      %738 = vmatmul.mubr.f32.gmra.mrb[0].mxu0 %v438
      %v739 = vpop.f32.mrb[0].mxu0
      %v740 = vadd.f32 %v566, %v739
      %v741 = vpop.f32.mrb[0].mxu0
      %742 = vmatprep.mubr.f32.mxu0 0.0
      %743 = vmatmul.mubr.f32.gmra.mrb[0].mxu0 %v439
      %v744 = vpop.f32.mrb[0].mxu0
      %v745 = vadd.f32 %v566, %v744
      %v746 = vpop.f32.mrb[0].mxu0
      %747 = vmatprep.mubr.f32.mxu0 0.0
      %748 = vmatmul.mubr.f32.gmra.mrb[0].mxu0 %v440
      %v749 = vpop.f32.mrb[0].mxu0
      %v750 = vadd.f32 %v566, %v749
      %v751 = vpop.f32.mrb[0].mxu0
      %752 = vmatprep.mubr.f32.mxu0 0.0
      %753 = vmatmul.mubr.f32.gmra.mrb[0].mxu0 %v441
      %v754 = vpop.f32.mrb[0].mxu0
      %v755 = vadd.f32 %v566, %v754
      %v756 = vpop.f32.mrb[0].mxu0
      %757 = vmatprep.mubr.f32.mxu0 0.0
      %758 = vmatmul.mubr.f32.gmra.mrb[0].mxu0 %v442
      %v759 = vpop.f32.mrb[0].mxu0
      %v760 = vadd.f32 %v566, %v759
      %v761 = vpop.f32.mrb[0].mxu0
      %762 = vmatprep.mubr.f32.mxu0 0.0
      %763 = vmatmul.mubr.f32.gmra.mrb[0].mxu0 %v443
      %v764 = vpop.f32.mrb[0].mxu0
      %v765 = vadd.f32 %v566, %v764
      %v766 = vpop.f32.mrb[0].mxu0
      %767 = vmatprep.mubr.f32.mxu0 0.0
      %768 = vmatmul.mubr.f32.gmra.mrb[0].mxu0 %v444
      %v769 = vpop.f32.mrb[0].mxu0
      %v770 = vadd.f32 %v566, %v769
      %v771 = vpop.f32.mrb[0].mxu0
      %772 = vmatprep.mubr.f32.mxu0 0.0
      %773 = vmatmul.mubr.f32.gmra.mrb[0].mxu0 %v445
      %v774 = vpop.f32.mrb[0].mxu0
      %v775 = vadd.f32 %v566, %v774
      %v776 = vpop.f32.mrb[0].mxu0
      %777 = vmatprep.mubr.f32.mxu0 0.0
      %778 = vmatmul.mubr.f32.gmra.mrb[0].mxu0 %v446
      %v779 = vpop.f32.mrb[0].mxu0
      %v780 = vadd.f32 %v566, %v779
      %v781 = vpop.f32.mrb[0].mxu0
      %782 = vmatprep.mubr.f32.mxu0 0.0
      %783 = vmatmul.mubr.f32.gmra.mrb[0].mxu0 %v447
      %v784 = vpop.f32.mrb[0].mxu0
      %v785 = vadd.f32 %v566, %v784
      %v786 = vpop.f32.mrb[0].mxu0
      %787 = vmatprep.mubr.f32.mxu0 0.0
      %788 = vmatmul.mubr.f32.gmra.mrb[0].mxu0 %v448
      %v789 = vpop.f32.mrb[0].mxu0
      %v790 = vadd.f32 %v566, %v789
      %v791 = vpop.f32.mrb[0].mxu0
      %792 = vmatprep.mubr.f32.mxu0 0.0
      %793 = vmatmul.mubr.f32.gmra.mrb[0].mxu0 %v449
      %v794 = vpop.f32.mrb[0].mxu0
      %v795 = vadd.f32 %v566, %v794
      %v796 = vpop.f32.mrb[0].mxu0
      %797 = vmatprep.mubr.f32.mxu0 0.0
      %798 = vmatmul.mubr.f32.gmra.mrb[0].mxu0 %v450
      %v799 = vpop.f32.mrb[0].mxu0
      %v800 = vadd.f32 %v566, %v799
      %v801 = vpop.f32.mrb[0].mxu0
      %802 = vmatprep.mubr.f32.mxu0 0.0
      %803 = vmatmul.mubr.f32.gmra.mrb[0].mxu0 %v451
      %v804 = vpop.f32.mrb[0].mxu0
      %v805 = vadd.f32 %v566, %v804
      %v806 = vpop.f32.mrb[0].mxu0
      %807 = vmatprep.mubr.f32.mxu0 0.0
      %808 = vmatmul.mubr.f32.gmra.mrb[0].mxu0 %v452
      %v809 = vpop.f32.mrb[0].mxu0
      %v810 = vadd.f32 %v566, %v809
      %v811 = vpop.f32.mrb[0].mxu0
      %812 = vmatprep.mubr.f32.mxu0 0.0
      %813 = vmatmul.mubr.f32.gmra.mrb[0].mxu0 %v453
      %v814 = vpop.f32.mrb[0].mxu0
      %v815 = vadd.f32 %v566, %v814
      %v816 = vpop.f32.mrb[0].mxu0
      %817 = vmatprep.mubr.f32.mxu0 0.0
      %818 = vmatmul.mubr.f32.gmra.mrb[0].mxu0 %v454
      %v819 = vpop.f32.mrb[0].mxu0
      %v820 = vadd.f32 %v566, %v819
      %v821 = vpop.f32.mrb[0].mxu0
      %822 = vmatprep.mubr.f32.mxu0 0.0
      %823 = vmatmul.mubr.f32.gmra.mrb[0].mxu0 %v455
      %v824 = vpop.f32.mrb[0].mxu0
      %v825 = vadd.f32 %v566, %v824
      %v826 = vpop.f32.mrb[0].mxu0
      %827 = vmatprep.mubr.f32.mxu0 0.0
      %828 = vmatmul.mubr.f32.gmra.mrb[0].mxu0 %v456
      %v829 = vpop.f32.mrb[0].mxu0
      %v830 = vadd.f32 %v566, %v829
      %v831 = vpop.f32.mrb[0].mxu0
      %832 = vmatprep.mubr.f32.mxu0 0.0
      %833 = vmatmul.mubr.f32.gmra.mrb[0].mxu0 %v457
      %v834 = vpop.f32.mrb[0].mxu0
      %v835 = vadd.f32 %v566, %v834
      %v836 = vpop.f32.mrb[0].mxu0
      %837 = vmatprep.mubr.f32.mxu0 0.0
      %838 = vmatmul.mubr.f32.gmra.mrb[0].mxu0 %v458
      %v839 = vpop.f32.mrb[0].mxu0
      %v840 = vadd.f32 %v566, %v839
      %v841 = vpop.f32.mrb[0].mxu0
      %842 = vmatprep.mubr.f32.mxu0 0.0
      %843 = vmatmul.mubr.f32.gmra.mrb[0].mxu0 %v459
      %v844 = vpop.f32.mrb[0].mxu0
      %v845 = vadd.f32 %v566, %v844
      %v846 = vpop.f32.mrb[0].mxu0
      %847 = vmatprep.mubr.f32.mxu0 0.0
      %848 = vmatmul.mubr.f32.gmra.mrb[0].mxu0 %v460
      %v849 = vpop.f32.mrb[0].mxu0
      %v850 = vadd.f32 %v566, %v849
      %v851 = vpop.f32.mrb[0].mxu0
      %852 = vmatprep.mubr.f32.mxu0 0.0
      %853 = vmatmul.mubr.f32.gmra.mrb[0].mxu0 %v461
      %v854 = vpop.f32.mrb[0].mxu0
      %v855 = vadd.f32 %v566, %v854
      %v856 = vpop.f32.mrb[0].mxu0
      %857 = vmatprep.mubr.f32.mxu0 0.0
      %858 = vmatmul.mubr.f32.gmra.mrb[0].mxu0 %v462
      %v859 = vpop.f32.mrb[0].mxu0
      %v860 = vadd.f32 %v566, %v859
      %v861 = vpop.f32.mrb[0].mxu0
      %862 = vmatprep.mubr.f32.mxu0 0.0
      %863 = vmatmul.mubr.f32.gmra.mrb[0].mxu0 %v463
      %v864 = vpop.f32.mrb[0].mxu0
      %v865 = vadd.f32 %v566, %v864
      %v866 = vpop.f32.mrb[0].mxu0
      %867 = vmatprep.mubr.f32.mxu0 0.0
      %868 = vmatmul.mubr.f32.gmra.mrb[0].mxu0 %v464
      %v869 = vpop.f32.mrb[0].mxu0
      %v870 = vadd.f32 %v566, %v869
      %v871 = vpop.f32.mrb[0].mxu0
      %872 = vmatprep.mubr.f32.mxu0 0.0
      %873 = vmatmul.mubr.f32.gmra.mrb[0].mxu0 %v465
      %v874 = vpop.f32.mrb[0].mxu0
      %v875 = vadd.f32 %v566, %v874
      %v876 = vpop.f32.mrb[0].mxu0
      %877 = vmatprep.mubr.f32.mxu0 0.0
      %878 = vmatmul.mubr.f32.gmra.mrb[0].mxu0 %v466
      %v879 = vpop.f32.mrb[0].mxu0
      %v880 = vadd.f32 %v566, %v879
      %v881 = vpop.f32.mrb[0].mxu0
      %882 = vmatprep.mubr.f32.mxu0 0.0
      %883 = vmatmul.mubr.f32.gmra.mrb[0].mxu0 %v467
      %v884 = vpop.f32.mrb[0].mxu0
      %v885 = vadd.f32 %v566, %v884
      %v886 = vpop.f32.mrb[0].mxu0
      %887 = vmatprep.mubr.f32.mxu0 0.0
      %888 = vmatmul.mubr.f32.gmra.mrb[0].mxu0 %v468
      %v889 = vpop.f32.mrb[0].mxu0
      %v890 = vadd.f32 %v566, %v889
      %v891 = vpop.f32.mrb[0].mxu0
      %892 = vmatprep.mubr.f32.mxu0 0.0
      %893 = vmatmul.mubr.f32.gmra.mrb[0].mxu0 %v469
      %v894 = vpop.f32.mrb[0].mxu0
      %v895 = vadd.f32 %v566, %v894
      %v896 = vpop.f32.mrb[0].mxu0
      %897 = vmatprep.mubr.f32.mxu0 0.0
      %898 = vmatmul.mubr.f32.gmra.mrb[0].mxu0 %v470
      %v899 = vpop.f32.mrb[0].mxu0
      %v900 = vadd.f32 %v566, %v899
      %v901 = vpop.f32.mrb[0].mxu0
      %902 = vmatprep.mubr.f32.mxu0 0.0
      %903 = vmatmul.mubr.f32.gmra.mrb[0].mxu0 %v471
      %v904 = vpop.f32.mrb[0].mxu0
      %v905 = vadd.f32 %v566, %v904
      %v906 = vpop.f32.mrb[0].mxu0
      %907 = vmatprep.mubr.f32.mxu0 0.0
      %908 = vmatmul.mubr.f32.gmra.mrb[0].mxu0 %v472
      %v909 = vpop.f32.mrb[0].mxu0
      %v910 = vadd.f32 %v566, %v909
      %v911 = vpop.f32.mrb[0].mxu0
      %912 = vmatprep.mubr.f32.mxu0 0.0
      %913 = vmatmul.mubr.f32.gmra.mrb[0].mxu0 %v473
      %v914 = vpop.f32.mrb[0].mxu0
      %v915 = vadd.f32 %v566, %v914
      %v916 = vpop.f32.mrb[0].mxu0
      %917 = vmatprep.mubr.f32.mxu0 0.0
      %918 = vmatmul.mubr.f32.gmra.mrb[0].mxu0 %v474
      %v919 = vpop.f32.mrb[0].mxu0
      %v920 = vadd.f32 %v566, %v919
      %v921 = vpop.f32.mrb[0].mxu0
      %922 = vmatprep.mubr.f32.mxu0 0.0
      %923 = vmatmul.mubr.f32.gmra.mrb[0].mxu0 %v475
      %v924 = vpop.f32.mrb[0].mxu0
      %v925 = vadd.f32 %v566, %v924
      %v926 = vpop.f32.mrb[0].mxu0
      %927 = vmatprep.mubr.f32.mxu0 0.0
      %928 = vmatmul.mubr.f32.gmra.mrb[0].mxu0 %v476
      %v929 = vpop.f32.mrb[0].mxu0
      %v930 = vadd.f32 %v566, %v929
      %v931 = vpop.f32.mrb[0].mxu0
      %932 = vmatprep.mubr.f32.mxu0 0.0
      %933 = vmatmul.mubr.f32.gmra.mrb[0].mxu0 %v477
      %v934 = vpop.f32.mrb[0].mxu0
      %v935 = vadd.f32 %v566, %v934
      %v936 = vpop.f32.mrb[0].mxu0
      %937 = vmatprep.mubr.f32.mxu0 0.0
      %938 = vmatmul.mubr.f32.gmra.mrb[0].mxu0 %v478
      %v939 = vpop.f32.mrb[0].mxu0
      %v940 = vadd.f32 %v566, %v939
      %v941 = vpop.f32.mrb[0].mxu0
      %942 = vmatprep.mubr.f32.mxu0 0.0
      %943 = vmatmul.mubr.f32.gmra.mrb[0].mxu0 %v479
      %v944 = vpop.f32.mrb[0].mxu0
      %v945 = vadd.f32 %v566, %v944
      %v946 = vpop.f32.mrb[0].mxu0
      %947 = vmatprep.mubr.f32.mxu0 0.0
      %948 = vmatmul.mubr.f32.gmra.mrb[0].mxu0 %v480
      %v949 = vpop.f32.mrb[0].mxu0
      %v950 = vadd.f32 %v566, %v949
      %v951 = vpop.f32.mrb[0].mxu0
      %952 = vmatprep.mubr.f32.mxu0 0.0
      %953 = vmatmul.mubr.f32.gmra.mrb[0].mxu0 %v481
      %v954 = vpop.f32.mrb[0].mxu0
      %v955 = vadd.f32 %v566, %v954
      %v956 = vpop.f32.mrb[0].mxu0
      %957 = vmatprep.mubr.f32.mxu0 0.0
      %958 = vmatmul.mubr.f32.gmra.mrb[0].mxu0 %v482
      %v959 = vpop.f32.mrb[0].mxu0
      %v960 = vadd.f32 %v566, %v959
      %v961 = vpop.f32.mrb[0].mxu0
      %962 = vmatprep.mubr.f32.mxu0 0.0
      %963 = vmatmul.mubr.f32.gmra.mrb[0].mxu0 %v483
      %v964 = vpop.f32.mrb[0].mxu0
      %v965 = vadd.f32 %v566, %v964
      %v966 = vpop.f32.mrb[0].mxu0
      %967 = vmatprep.mubr.f32.mxu0 0.0
      %968 = vmatmul.mubr.f32.gmra.mrb[0].mxu0 %v484
      %v969 = vpop.f32.mrb[0].mxu0
      %v970 = vadd.f32 %v566, %v969
      %v971 = vpop.f32.mrb[0].mxu0
      %972 = vmatprep.mubr.f32.mxu0 0.0
      %973 = vmatmul.mubr.f32.gmra.mrb[0].mxu0 %v485
      %v974 = vpop.f32.mrb[0].mxu0
      %v975 = vadd.f32 %v566, %v974
      %v976 = vpop.f32.mrb[0].mxu0
      %977 = vmatprep.mubr.f32.mxu0 0.0
      %978 = vmatmul.mubr.f32.gmra.mrb[0].mxu0 %v486
      %v979 = vpop.f32.mrb[0].mxu0
      %v980 = vadd.f32 %v566, %v979
      %v981 = vpop.f32.mrb[0].mxu0
      %982 = vmatprep.mubr.f32.mxu0 0.0
      %983 = vmatmul.mubr.f32.gmra.mrb[0].mxu0 %v487
      %v984 = vpop.f32.mrb[0].mxu0
      %v985 = vadd.f32 %v566, %v984
      %v986 = vpop.f32.mrb[0].mxu0
      %987 = vmatprep.mubr.f32.mxu0 0.0
      %988 = vmatmul.mubr.f32.gmra.mrb[0].mxu0 %v488
      %v989 = vpop.f32.mrb[0].mxu0
      %v990 = vadd.f32 %v566, %v989
      %v991 = vpop.f32.mrb[0].mxu0
      %992 = vmatprep.mubr.f32.mxu0 0.0
      %993 = vmatmul.mubr.f32.gmra.mrb[0].mxu0 %v489
      %v994 = vpop.f32.mrb[0].mxu0
      %v995 = vadd.f32 %v566, %v994
      %v996 = vpop.f32.mrb[0].mxu0
      %997 = vmatprep.mubr.f32.mxu0 0.0
      %998 = vmatmul.mubr.f32.gmra.mrb[0].mxu0 %v490
      %v999 = vpop.f32.mrb[0].mxu0
      %v1000 = vadd.f32 %v566, %v999
      %v1001 = vpop.f32.mrb[0].mxu0
      %1002 = vmatprep.mubr.f32.mxu0 0.0
      %1003 = vmatmul.mubr.f32.gmra.mrb[0].mxu0 %v491
      %v1004 = vpop.f32.mrb[0].mxu0
      %v1005 = vadd.f32 %v566, %v1004
      %v1006 = vpop.f32.mrb[0].mxu0
      %1007 = vmatprep.mubr.f32.mxu0 0.0
      %1008 = vmatmul.mubr.f32.gmra.mrb[0].mxu0 %v492
      %v1009 = vpop.f32.mrb[0].mxu0
      %v1010 = vadd.f32 %v566, %v1009
      %v1011 = vpop.f32.mrb[0].mxu0
      %1012 = vmatprep.mubr.f32.mxu0 0.0
      %1013 = vmatmul.mubr.f32.gmra.mrb[0].mxu0 %v493
      %v1014 = vpop.f32.mrb[0].mxu0
      %v1015 = vadd.f32 %v566, %v1014
      %v1016 = vpop.f32.mrb[0].mxu0
      %1017 = vmatprep.mubr.f32.mxu0 0.0
      %1018 = vmatmul.mubr.f32.gmra.mrb[0].mxu0 %v494
      %v1019 = vpop.f32.mrb[0].mxu0
      %v1020 = vadd.f32 %v566, %v1019
      %v1021 = vpop.f32.mrb[0].mxu0
      %1022 = vmatprep.mubr.f32.mxu0 0.0
      %1023 = vmatmul.mubr.f32.gmra.mrb[0].mxu0 %v495
      %v1024 = vpop.f32.mrb[0].mxu0
      %v1025 = vadd.f32 %v566, %v1024
      %v1026 = vpop.f32.mrb[0].mxu0
      %1027 = vmatprep.mubr.f32.mxu0 0.0
      %1028 = vmatmul.mubr.f32.gmra.mrb[0].mxu0 %v496
      %v1029 = vpop.f32.mrb[0].mxu0
      %v1030 = vadd.f32 %v566, %v1029
      %v1031 = vpop.f32.mrb[0].mxu0
      %1032 = vmatprep.mubr.f32.mxu0 0.0
      %1033 = vmatmul.mubr.f32.gmra.mrb[0].mxu0 %v497
      %v1034 = vpop.f32.mrb[0].mxu0
      %v1035 = vadd.f32 %v566, %v1034
      %v1036 = vpop.f32.mrb[0].mxu0
      %1037 = vmatprep.mubr.f32.mxu0 0.0
      %1038 = vmatmul.mubr.f32.gmra.mrb[0].mxu0 %v498
      %v1039 = vpop.f32.mrb[0].mxu0
      %v1040 = vadd.f32 %v566, %v1039
      %v1041 = vpop.f32.mrb[0].mxu0
      %1042 = vmatprep.mubr.f32.mxu0 0.0
      %1043 = vmatmul.mubr.f32.gmra.mrb[0].mxu0 %v499
      %v1044 = vpop.f32.mrb[0].mxu0
      %v1045 = vadd.f32 %v566, %v1044
      %v1046 = vpop.f32.mrb[0].mxu0
      %1047 = vmatprep.mubr.f32.mxu0 0.0
      %1048 = vmatmul.mubr.f32.gmra.mrb[0].mxu0 %v500
      %v1049 = vpop.f32.mrb[0].mxu0
      %v1050 = vadd.f32 %v566, %v1049
      %v1051 = vpop.f32.mrb[0].mxu0
      %1052 = vmatprep.mubr.f32.mxu0 0.0
      %1053 = vmatmul.mubr.f32.gmra.mrb[0].mxu0 %v501
      %v1054 = vpop.f32.mrb[0].mxu0
      %v1055 = vadd.f32 %v566, %v1054
      %v1056 = vpop.f32.mrb[0].mxu0
      %1057 = vmatprep.mubr.f32.mxu0 0.0
      %1058 = vmatmul.mubr.f32.gmra.mrb[0].mxu0 %v502
      %v1059 = vpop.f32.mrb[0].mxu0
      %v1060 = vadd.f32 %v566, %v1059
      %v1061 = vpop.f32.mrb[0].mxu0
      %1062 = vmatprep.mubr.f32.mxu0 0.0
      %1063 = vmatmul.mubr.f32.gmra.mrb[0].mxu0 %v503
      %v1064 = vpop.f32.mrb[0].mxu0
      %v1065 = vadd.f32 %v566, %v1064
      %v1066 = vpop.f32.mrb[0].mxu0
      %1067 = vmatprep.mubr.f32.mxu0 0.0
      %1068 = vmatmul.mubr.f32.gmra.mrb[0].mxu0 %v504
      %v1069 = vpop.f32.mrb[0].mxu0
      %v1070 = vadd.f32 %v566, %v1069
      %v1071 = vpop.f32.mrb[0].mxu0
      %1072 = vmatprep.mubr.f32.mxu0 0.0
      %1073 = vmatmul.mubr.f32.gmra.mrb[0].mxu0 %v505
      %v1074 = vpop.f32.mrb[0].mxu0
      %v1075 = vadd.f32 %v566, %v1074
      %v1076 = vpop.f32.mrb[0].mxu0
      %1077 = vmatprep.mubr.f32.mxu0 0.0
      %1078 = vmatmul.mubr.f32.gmra.mrb[0].mxu0 %v506
      %v1079 = vpop.f32.mrb[0].mxu0
      %v1080 = vadd.f32 %v566, %v1079
      %v1081 = vpop.f32.mrb[0].mxu0
      %1082 = vmatprep.mubr.f32.mxu0 0.0
      %1083 = vmatmul.mubr.f32.gmra.mrb[0].mxu0 %v507
      %v1084 = vpop.f32.mrb[0].mxu0
      %v1085 = vadd.f32 %v566, %v1084
      %v1086 = vpop.f32.mrb[0].mxu0
      %1087 = vmatprep.mubr.f32.mxu0 0.0
      %1088 = vmatmul.mubr.f32.gmra.mrb[0].mxu0 %v508
      %v1089 = vpop.f32.mrb[0].mxu0
      %v1090 = vadd.f32 %v566, %v1089
      %v1091 = vpop.f32.mrb[0].mxu0
      %1092 = vmatprep.mubr.f32.mxu0 0.0
      %1093 = vmatmul.mubr.f32.gmra.mrb[0].mxu0 %v509
      %v1094 = vpop.f32.mrb[0].mxu0
      %v1095 = vadd.f32 %v566, %v1094
      %v1096 = vpop.f32.mrb[0].mxu0
      %1097 = vmatprep.mubr.f32.mxu0 0.0
      %1098 = vmatmul.mubr.f32.gmra.mrb[0].mxu0 %v510
      %v1099 = vpop.f32.mrb[0].mxu0
      %v1100 = vadd.f32 %v566, %v1099
      %v1101 = vpop.f32.mrb[0].mxu0
      %1102 = vmatprep.mubr.f32.mxu0 0.0
      %1103 = vmatmul.mubr.f32.gmra.mrb[0].mxu0 %v511
      %v1104 = vpop.f32.mrb[0].mxu0
      %v1105 = vadd.f32 %v566, %v1104
      %v1106 = vpop.f32.mrb[0].mxu0
      %1107 = vmatprep.mubr.f32.mxu0 0.0
      %1108 = vmatmul.mubr.f32.gmra.mrb[0].mxu0 %v512
      %v1109 = vpop.f32.mrb[0].mxu0
      %v1110 = vadd.f32 %v566, %v1109
      %v1111 = vpop.f32.mrb[0].mxu0
      %1112 = vmatprep.mubr.f32.mxu0 0.0
      %1113 = vmatmul.mubr.f32.gmra.mrb[0].mxu0 %v513
      %v1114 = vpop.f32.mrb[0].mxu0
      %v1115 = vadd.f32 %v566, %v1114
      %v1116 = vpop.f32.mrb[0].mxu0
      %1117 = vmatprep.mubr.f32.mxu0 0.0
      %1118 = vmatmul.mubr.f32.gmra.mrb[0].mxu0 %v514
      %v1119 = vpop.f32.mrb[0].mxu0
      %v1120 = vadd.f32 %v566, %v1119
      %v1121 = vpop.f32.mrb[0].mxu0
      %1122 = vmatprep.mubr.f32.mxu0 0.0
      %1123 = vmatmul.mubr.f32.gmra.mrb[0].mxu0 %v515
      %v1124 = vpop.f32.mrb[0].mxu0
      %v1125 = vadd.f32 %v566, %v1124
      %v1126 = vpop.f32.mrb[0].mxu0
      %1127 = vmatprep.mubr.f32.mxu0 0.0
      %1128 = vmatmul.mubr.f32.gmra.mrb[0].mxu0 %v516
      %v1129 = vpop.f32.mrb[0].mxu0
      %v1130 = vadd.f32 %v566, %v1129
      %v1131 = vpop.f32.mrb[0].mxu0
      %1132 = vmatprep.mubr.f32.mxu0 0.0
      %1133 = vmatmul.mubr.f32.gmra.mrb[0].mxu0 %v517
      %v1134 = vpop.f32.mrb[0].mxu0
      %v1135 = vadd.f32 %v566, %v1134
      %v1136 = vpop.f32.mrb[0].mxu0
      %1137 = vmatprep.mubr.f32.mxu0 0.0
      %1138 = vmatmul.mubr.f32.gmra.mrb[0].mxu0 %v518
      %v1139 = vpop.f32.mrb[0].mxu0
      %v1140 = vadd.f32 %v566, %v1139
      %v1141 = vpop.f32.mrb[0].mxu0
      %1142 = vmatprep.mubr.f32.mxu0 0.0
      %1143 = vmatmul.mubr.f32.gmra.mrb[0].mxu0 %v519
      %v1144 = vpop.f32.mrb[0].mxu0
      %v1145 = vadd.f32 %v566, %v1144
      %v1146 = vpop.f32.mrb[0].mxu0
      %1147 = vmatprep.mubr.f32.mxu0 0.0
      %1148 = vmatmul.mubr.f32.gmra.mrb[0].mxu0 %v520
      %v1149 = vpop.f32.mrb[0].mxu0
      %v1150 = vadd.f32 %v566, %v1149
      %v1151 = vpop.f32.mrb[0].mxu0
      %1152 = vmatprep.mubr.f32.mxu0 0.0
      %1153 = vmatmul.mubr.f32.gmra.mrb[0].mxu0 %v521
      %v1154 = vpop.f32.mrb[0].mxu0
      %v1155 = vadd.f32 %v566, %v1154
      %v1156 = vpop.f32.mrb[0].mxu0
      %1157 = vmatprep.mubr.f32.mxu0 0.0
      %1158 = vmatmul.mubr.f32.gmra.mrb[0].mxu0 %v522
      %v1159 = vpop.f32.mrb[0].mxu0
      %v1160 = vadd.f32 %v566, %v1159
      %v1161 = vpop.f32.mrb[0].mxu0
      %1162 = vmatprep.mubr.f32.mxu0 0.0
      %1163 = vmatmul.mubr.f32.gmra.mrb[0].mxu0 %v523
      %v1164 = vpop.f32.mrb[0].mxu0
      %v1165 = vadd.f32 %v566, %v1164
      %v1166 = vpop.f32.mrb[0].mxu0
      %1167 = vmatprep.mubr.f32.mxu0 0.0
      %1168 = vmatmul.mubr.f32.gmra.mrb[0].mxu0 %v524
      %v1169 = vpop.f32.mrb[0].mxu0
      %v1170 = vadd.f32 %v566, %v1169
      %v1171 = vpop.f32.mrb[0].mxu0
      %1172 = vmatprep.mubr.f32.mxu0 0.0
      %1173 = vmatmul.mubr.f32.gmra.mrb[0].mxu0 %v525
      %v1174 = vpop.f32.mrb[0].mxu0
      %v1175 = vadd.f32 %v566, %v1174
      %v1176 = vpop.f32.mrb[0].mxu0
      %1177 = vmatprep.mubr.f32.mxu0 0.0
      %1178 = vmatmul.mubr.f32.gmra.mrb[0].mxu0 %v526
      %v1179 = vpop.f32.mrb[0].mxu0
      %v1180 = vadd.f32 %v566, %v1179
      %v1181 = vpop.f32.mrb[0].mxu0
      %1182 = vmatprep.mubr.f32.mxu0 0.0
      %1183 = vmatmul.mubr.f32.gmra.mrb[0].mxu0 %v527
      %v1184 = vpop.f32.mrb[0].mxu0
      %v1185 = vadd.f32 %v566, %v1184
      %v1186 = vpop.f32.mrb[0].mxu0
      %1187 = vmatprep.mubr.f32.mxu0 0.0
      %1188 = vmatmul.mubr.f32.gmra.mrb[0].mxu0 %v528
      %v1189 = vpop.f32.mrb[0].mxu0
      %v1190 = vadd.f32 %v566, %v1189
      %v1191 = vpop.f32.mrb[0].mxu0
      %1192 = vmatprep.mubr.f32.mxu0 0.0
      %1193 = vmatmul.mubr.f32.gmra.mrb[0].mxu0 %v529
      %v1194 = vpop.f32.mrb[0].mxu0
      %v1195 = vadd.f32 %v566, %v1194
      %v1196 = vpop.f32.mrb[0].mxu0
      %1197 = vmatprep.mubr.f32.mxu0 0.0
      %1198 = vmatmul.mubr.f32.gmra.mrb[0].mxu0 %v530
      %v1199 = vpop.f32.mrb[0].mxu0
      %v1200 = vadd.f32 %v566, %v1199
      %v1201 = vpop.f32.mrb[0].mxu0
      %1202 = vmatprep.mubr.f32.mxu0 0.0
      %1203 = vmatmul.mubr.f32.gmra.mrb[0].mxu0 %v531
      %v1204 = vpop.f32.mrb[0].mxu0
      %v1205 = vadd.f32 %v566, %v1204
      %v1206 = vpop.f32.mrb[0].mxu0
      %1207 = vmatprep.mubr.f32.mxu0 0.0
      %1208 = vmatmul.mubr.f32.gmra.mrb[0].mxu0 %v532
      %v1209 = vpop.f32.mrb[0].mxu0
      %v1210 = vadd.f32 %v566, %v1209
      %v1211 = vpop.f32.mrb[0].mxu0
      %1212 = vmatprep.mubr.f32.mxu0 0.0
      %1213 = vmatmul.mubr.f32.gmra.mrb[0].mxu0 %v533
      %v1214 = vpop.f32.mrb[0].mxu0
      %v1215 = vadd.f32 %v566, %v1214
      %v1216 = vpop.f32.mrb[0].mxu0
      %1217 = vmatprep.mubr.f32.mxu0 0.0
      %1218 = vmatmul.mubr.f32.gmra.mrb[0].mxu0 %v534
      %v1219 = vpop.f32.mrb[0].mxu0
      %v1220 = vadd.f32 %v566, %v1219
      %v1221 = vpop.f32.mrb[0].mxu0
      %1222 = vmatprep.mubr.f32.mxu0 0.0
      %1223 = vmatmul.mubr.f32.gmra.mrb[0].mxu0 %v535
      %v1224 = vpop.f32.mrb[0].mxu0
      %v1225 = vadd.f32 %v566, %v1224
      %v1226 = vpop.f32.mrb[0].mxu0
      %1227 = vmatprep.mubr.f32.mxu0 0.0
      %1228 = vmatmul.mubr.f32.gmra.mrb[0].mxu0 %v536
      %v1229 = vpop.f32.mrb[0].mxu0
      %v1230 = vadd.f32 %v566, %v1229
      %v1231 = vpop.f32.mrb[0].mxu0
      %1232 = vmatprep.mubr.f32.mxu0 0.0
      %1233 = vmatmul.mubr.f32.gmra.mrb[0].mxu0 %v537
      %v1234 = vpop.f32.mrb[0].mxu0
      %v1235 = vadd.f32 %v566, %v1234
      %v1236 = vpop.f32.mrb[0].mxu0
      %1237 = vmatprep.mubr.f32.mxu0 0.0
      %1238 = vmatmul.mubr.f32.gmra.mrb[0].mxu0 %v538
      %v1239 = vpop.f32.mrb[0].mxu0
      %v1240 = vadd.f32 %v566, %v1239
      %v1241 = vpop.f32.mrb[0].mxu0
      %1242 = vmatprep.mubr.f32.mxu0 0.0
      %1243 = vmatmul.mubr.f32.gmra.mrb[0].mxu0 %v539
      %v1244 = vpop.f32.mrb[0].mxu0
      %v1245 = vadd.f32 %v566, %v1244
      %v1246 = vpop.f32.mrb[0].mxu0
      %1247 = vmatprep.mubr.f32.mxu0 0.0
      %1248 = vmatmul.mubr.f32.gmra.mrb[0].mxu0 %v540
      %v1249 = vpop.f32.mrb[0].mxu0
      %v1250 = vadd.f32 %v566, %v1249
      %v1251 = vpop.f32.mrb[0].mxu0
      %1252 = vmatprep.mubr.f32.mxu0 0.0
      %1253 = vmatmul.mubr.f32.gmra.mrb[0].mxu0 %v541
      %v1254 = vpop.f32.mrb[0].mxu0
      %v1255 = vadd.f32 %v566, %v1254
      %v1256 = vpop.f32.mrb[0].mxu0
      %1257 = vmatprep.mubr.f32.mxu0 0.0
      %1258 = vmatmul.mubr.f32.gmra.mrb[0].mxu0 %v542
      %v1259 = vpop.f32.mrb[0].mxu0
      %v1260 = vadd.f32 %v566, %v1259
      %v1261 = vpop.f32.mrb[0].mxu0
      %1262 = vmatprep.mubr.f32.mxu0 0.0
      %1263 = vmatmul.mubr.f32.gmra.mrb[0].mxu0 %v543
      %v1264 = vpop.f32.mrb[0].mxu0
      %v1265 = vadd.f32 %v566, %v1264
      %v1266 = vpop.f32.mrb[0].mxu0
      %1267 = vmatprep.mubr.f32.mxu0 0.0
      %1268 = vmatmul.mubr.f32.gmra.mrb[0].mxu0 %v544
      %v1269 = vpop.f32.mrb[0].mxu0
      %v1270 = vadd.f32 %v566, %v1269
      %v1271 = vpop.f32.mrb[0].mxu0
      %1272 = vdwg.mxu0
      %v1273 = vmax.f32 %v635, 0.0
      %v1274 = vmax.f32 %v640, 0.0
      %v1275 = vmax.f32 %v645, 0.0
      %v1276 = vmax.f32 %v650, 0.0
      %v1277 = vmax.f32 %v655, 0.0
      %v1278 = vmax.f32 %v660, 0.0
      %v1279 = vmax.f32 %v665, 0.0
      %v1280 = vmax.f32 %v670, 0.0
      %v1281 = vmax.f32 %v675, 0.0
      %v1282 = vmax.f32 %v680, 0.0
      %v1283 = vmax.f32 %v685, 0.0
      %v1284 = vmax.f32 %v690, 0.0
      %v1285 = vmax.f32 %v695, 0.0
      %v1286 = vmax.f32 %v700, 0.0
      %v1287 = vmax.f32 %v705, 0.0
      %v1288 = vmax.f32 %v710, 0.0
      %v1289 = vmax.f32 %v715, 0.0
      %v1290 = vmax.f32 %v720, 0.0
      %v1291 = vmax.f32 %v725, 0.0
      %v1292 = vmax.f32 %v730, 0.0
      %v1293 = vmax.f32 %v735, 0.0
      %v1294 = vmax.f32 %v740, 0.0
      %v1295 = vmax.f32 %v745, 0.0
      %v1296 = vmax.f32 %v750, 0.0
      %v1297 = vmax.f32 %v755, 0.0
      %v1298 = vmax.f32 %v760, 0.0
      %v1299 = vmax.f32 %v765, 0.0
      %v1300 = vmax.f32 %v770, 0.0
      %v1301 = vmax.f32 %v775, 0.0
      %v1302 = vmax.f32 %v780, 0.0
      %v1303 = vmax.f32 %v785, 0.0
      %v1304 = vmax.f32 %v790, 0.0
      %v1305 = vmax.f32 %v795, 0.0
      %v1306 = vmax.f32 %v800, 0.0
      %v1307 = vmax.f32 %v805, 0.0
      %v1308 = vmax.f32 %v810, 0.0
      %v1309 = vmax.f32 %v815, 0.0
      %v1310 = vmax.f32 %v820, 0.0
      %v1311 = vmax.f32 %v825, 0.0
      %v1312 = vmax.f32 %v830, 0.0
      %v1313 = vmax.f32 %v835, 0.0
      %v1314 = vmax.f32 %v840, 0.0
      %v1315 = vmax.f32 %v845, 0.0
      %v1316 = vmax.f32 %v850, 0.0
      %v1317 = vmax.f32 %v855, 0.0
      %v1318 = vmax.f32 %v860, 0.0
      %v1319 = vmax.f32 %v865, 0.0
      %v1320 = vmax.f32 %v870, 0.0
      %v1321 = vmax.f32 %v875, 0.0
      %v1322 = vmax.f32 %v880, 0.0
      %v1323 = vmax.f32 %v885, 0.0
      %v1324 = vmax.f32 %v890, 0.0
      %v1325 = vmax.f32 %v895, 0.0
      %v1326 = vmax.f32 %v900, 0.0
      %v1327 = vmax.f32 %v905, 0.0
      %v1328 = vmax.f32 %v910, 0.0
      %v1329 = vmax.f32 %v915, 0.0
      %v1330 = vmax.f32 %v920, 0.0
      %v1331 = vmax.f32 %v925, 0.0
      %v1332 = vmax.f32 %v930, 0.0
      %v1333 = vmax.f32 %v935, 0.0
      %v1334 = vmax.f32 %v940, 0.0
      %v1335 = vmax.f32 %v945, 0.0
      %v1336 = vmax.f32 %v950, 0.0
      %v1337 = vmax.f32 %v955, 0.0
      %v1338 = vmax.f32 %v960, 0.0
      %v1339 = vmax.f32 %v965, 0.0
      %v1340 = vmax.f32 %v970, 0.0
      %v1341 = vmax.f32 %v975, 0.0
      %v1342 = vmax.f32 %v980, 0.0
      %v1343 = vmax.f32 %v985, 0.0
      %v1344 = vmax.f32 %v990, 0.0
      %v1345 = vmax.f32 %v995, 0.0
      %v1346 = vmax.f32 %v1000, 0.0
      %v1347 = vmax.f32 %v1005, 0.0
      %v1348 = vmax.f32 %v1010, 0.0
      %v1349 = vmax.f32 %v1015, 0.0
      %v1350 = vmax.f32 %v1020, 0.0
      %v1351 = vmax.f32 %v1025, 0.0
      %v1352 = vmax.f32 %v1030, 0.0
      %v1353 = vmax.f32 %v1035, 0.0
      %v1354 = vmax.f32 %v1040, 0.0
      %v1355 = vmax.f32 %v1045, 0.0
      %v1356 = vmax.f32 %v1050, 0.0
      %v1357 = vmax.f32 %v1055, 0.0
      %v1358 = vmax.f32 %v1060, 0.0
      %v1359 = vmax.f32 %v1065, 0.0
      %v1360 = vmax.f32 %v1070, 0.0
      %v1361 = vmax.f32 %v1075, 0.0
      %v1362 = vmax.f32 %v1080, 0.0
      %v1363 = vmax.f32 %v1085, 0.0
      %v1364 = vmax.f32 %v1090, 0.0
      %v1365 = vmax.f32 %v1095, 0.0
      %v1366 = vmax.f32 %v1100, 0.0
      %v1367 = vmax.f32 %v1105, 0.0
      %v1368 = vmax.f32 %v1110, 0.0
      %v1369 = vmax.f32 %v1115, 0.0
      %v1370 = vmax.f32 %v1120, 0.0
      %v1371 = vmax.f32 %v1125, 0.0
      %v1372 = vmax.f32 %v1130, 0.0
      %v1373 = vmax.f32 %v1135, 0.0
      %v1374 = vmax.f32 %v1140, 0.0
      %v1375 = vmax.f32 %v1145, 0.0
      %v1376 = vmax.f32 %v1150, 0.0
      %v1377 = vmax.f32 %v1155, 0.0
      %v1378 = vmax.f32 %v1160, 0.0
      %v1379 = vmax.f32 %v1165, 0.0
      %v1380 = vmax.f32 %v1170, 0.0
      %v1381 = vmax.f32 %v1175, 0.0
      %v1382 = vmax.f32 %v1180, 0.0
      %v1383 = vmax.f32 %v1185, 0.0
      %v1384 = vmax.f32 %v1190, 0.0
      %v1385 = vmax.f32 %v1195, 0.0
      %v1386 = vmax.f32 %v1200, 0.0
      %v1387 = vmax.f32 %v1205, 0.0
      %v1388 = vmax.f32 %v1210, 0.0
      %v1389 = vmax.f32 %v1215, 0.0
      %v1390 = vmax.f32 %v1220, 0.0
      %v1391 = vmax.f32 %v1225, 0.0
      %v1392 = vmax.f32 %v1230, 0.0
      %v1393 = vmax.f32 %v1235, 0.0
      %v1394 = vmax.f32 %v1240, 0.0
      %v1395 = vmax.f32 %v1245, 0.0
      %v1396 = vmax.f32 %v1250, 0.0
      %v1397 = vmax.f32 %v1255, 0.0
      %v1398 = vmax.f32 %v1260, 0.0
      %v1399 = vmax.f32 %v1265, 0.0
      %v1400 = vmax.f32 %v1270, 0.0
      %vm1401 = vcmask 261120
      %v1402 = vsel %vm1401, %v1273, 0.0
      %v1403 = vsel %vm1401, %v1274, 0.0
      %v1404 = vadd.f32 %v1402, %v1403
      %v1405 = vsel %vm1401, %v1275, 0.0
      %v1406 = vadd.f32 %v1404, %v1405
      %v1407 = vsel %vm1401, %v1276, 0.0
      %v1408 = vadd.f32 %v1406, %v1407
      %v1409 = vsel %vm1401, %v1277, 0.0
      %v1410 = vadd.f32 %v1408, %v1409
      %v1411 = vsel %vm1401, %v1278, 0.0
      %v1412 = vadd.f32 %v1410, %v1411
      %v1413 = vsel %vm1401, %v1279, 0.0
      %v1414 = vadd.f32 %v1412, %v1413
      %v1415 = vsel %vm1401, %v1280, 0.0
      %v1416 = vadd.f32 %v1414, %v1415
      %v1417 = vsel %vm1401, %v1281, 0.0
      %v1418 = vadd.f32 %v1416, %v1417
      %v1419 = vsel %vm1401, %v1282, 0.0
      %v1420 = vadd.f32 %v1418, %v1419
      %v1421 = vsel %vm1401, %v1283, 0.0
      %v1422 = vadd.f32 %v1420, %v1421
      %v1423 = vsel %vm1401, %v1284, 0.0
      %v1424 = vadd.f32 %v1422, %v1423
      %v1425 = vsel %vm1401, %v1285, 0.0
      %v1426 = vadd.f32 %v1424, %v1425
      %v1427 = vsel %vm1401, %v1286, 0.0
      %v1428 = vadd.f32 %v1426, %v1427
      %v1429 = vsel %vm1401, %v1287, 0.0
      %v1430 = vadd.f32 %v1428, %v1429
      %v1431 = vsel %vm1401, %v1288, 0.0
      %v1432 = vadd.f32 %v1430, %v1431
      %v1433 = vsel %vm1401, %v1289, 0.0
      %v1434 = vadd.f32 %v1432, %v1433
      %v1435 = vsel %vm1401, %v1290, 0.0
      %v1436 = vadd.f32 %v1434, %v1435
      %v1437 = vsel %vm1401, %v1291, 0.0
      %v1438 = vadd.f32 %v1436, %v1437
      %v1439 = vsel %vm1401, %v1292, 0.0
      %v1440 = vadd.f32 %v1438, %v1439
      %v1441 = vsel %vm1401, %v1293, 0.0
      %v1442 = vadd.f32 %v1440, %v1441
      %v1443 = vsel %vm1401, %v1294, 0.0
      %v1444 = vadd.f32 %v1442, %v1443
      %v1445 = vsel %vm1401, %v1295, 0.0
      %v1446 = vadd.f32 %v1444, %v1445
      %v1447 = vsel %vm1401, %v1296, 0.0
      %v1448 = vadd.f32 %v1446, %v1447
      %v1449 = vsel %vm1401, %v1297, 0.0
      %v1450 = vadd.f32 %v1448, %v1449
      %v1451 = vsel %vm1401, %v1298, 0.0
      %v1452 = vadd.f32 %v1450, %v1451
      %v1453 = vsel %vm1401, %v1299, 0.0
      %v1454 = vadd.f32 %v1452, %v1453
      %v1455 = vsel %vm1401, %v1300, 0.0
      %v1456 = vadd.f32 %v1454, %v1455
      %v1457 = vsel %vm1401, %v1301, 0.0
      %v1458 = vadd.f32 %v1456, %v1457
      %v1459 = vsel %vm1401, %v1302, 0.0
      %v1460 = vadd.f32 %v1458, %v1459
      %v1461 = vsel %vm1401, %v1303, 0.0
      %v1462 = vadd.f32 %v1460, %v1461
      %v1463 = vsel %vm1401, %v1304, 0.0
      %v1464 = vadd.f32 %v1462, %v1463
      %v1465 = vrot.slane %v1464, 4
      %v1466 = vadd.f32 %v1464, %v1465
      %v1467 = vrot.slane %v1466, 2
      %v1468 = vadd.f32 %v1466, %v1467
      %v1469 = vrot.slane %v1468, 1
      %v1470 = vadd.f32 %v1468, %v1469
      %v1471 = vsel %vm1401, %v1305, 0.0
      %v1472 = vsel %vm1401, %v1306, 0.0
      %v1473 = vadd.f32 %v1471, %v1472
      %v1474 = vsel %vm1401, %v1307, 0.0
      %v1475 = vadd.f32 %v1473, %v1474
      %v1476 = vsel %vm1401, %v1308, 0.0
      %v1477 = vadd.f32 %v1475, %v1476
      %v1478 = vsel %vm1401, %v1309, 0.0
      %v1479 = vadd.f32 %v1477, %v1478
      %v1480 = vsel %vm1401, %v1310, 0.0
      %v1481 = vadd.f32 %v1479, %v1480
      %v1482 = vsel %vm1401, %v1311, 0.0
      %v1483 = vadd.f32 %v1481, %v1482
      %v1484 = vsel %vm1401, %v1312, 0.0
      %v1485 = vadd.f32 %v1483, %v1484
      %v1486 = vsel %vm1401, %v1313, 0.0
      %v1487 = vadd.f32 %v1485, %v1486
      %v1488 = vsel %vm1401, %v1314, 0.0
      %v1489 = vadd.f32 %v1487, %v1488
      %v1490 = vsel %vm1401, %v1315, 0.0
      %v1491 = vadd.f32 %v1489, %v1490
      %v1492 = vsel %vm1401, %v1316, 0.0
      %v1493 = vadd.f32 %v1491, %v1492
      %v1494 = vsel %vm1401, %v1317, 0.0
      %v1495 = vadd.f32 %v1493, %v1494
      %v1496 = vsel %vm1401, %v1318, 0.0
      %v1497 = vadd.f32 %v1495, %v1496
      %v1498 = vsel %vm1401, %v1319, 0.0
      %v1499 = vadd.f32 %v1497, %v1498
      %v1500 = vsel %vm1401, %v1320, 0.0
      %v1501 = vadd.f32 %v1499, %v1500
      %v1502 = vsel %vm1401, %v1321, 0.0
      %v1503 = vadd.f32 %v1501, %v1502
      %v1504 = vsel %vm1401, %v1322, 0.0
      %v1505 = vadd.f32 %v1503, %v1504
      %v1506 = vsel %vm1401, %v1323, 0.0
      %v1507 = vadd.f32 %v1505, %v1506
      %v1508 = vsel %vm1401, %v1324, 0.0
      %v1509 = vadd.f32 %v1507, %v1508
      %v1510 = vsel %vm1401, %v1325, 0.0
      %v1511 = vadd.f32 %v1509, %v1510
      %v1512 = vsel %vm1401, %v1326, 0.0
      %v1513 = vadd.f32 %v1511, %v1512
      %v1514 = vsel %vm1401, %v1327, 0.0
      %v1515 = vadd.f32 %v1513, %v1514
      %v1516 = vsel %vm1401, %v1328, 0.0
      %v1517 = vadd.f32 %v1515, %v1516
      %v1518 = vsel %vm1401, %v1329, 0.0
      %v1519 = vadd.f32 %v1517, %v1518
      %v1520 = vsel %vm1401, %v1330, 0.0
      %v1521 = vadd.f32 %v1519, %v1520
      %v1522 = vsel %vm1401, %v1331, 0.0
      %v1523 = vadd.f32 %v1521, %v1522
      %v1524 = vsel %vm1401, %v1332, 0.0
      %v1525 = vadd.f32 %v1523, %v1524
      %v1526 = vsel %vm1401, %v1333, 0.0
      %v1527 = vadd.f32 %v1525, %v1526
      %v1528 = vsel %vm1401, %v1334, 0.0
      %v1529 = vadd.f32 %v1527, %v1528
      %v1530 = vsel %vm1401, %v1335, 0.0
      %v1531 = vadd.f32 %v1529, %v1530
      %v1532 = vsel %vm1401, %v1336, 0.0
      %v1533 = vadd.f32 %v1531, %v1532
      %v1534 = vrot.slane %v1533, 4
      %v1535 = vadd.f32 %v1533, %v1534
      %v1536 = vrot.slane %v1535, 2
      %v1537 = vadd.f32 %v1535, %v1536
      %v1538 = vrot.slane %v1537, 1
      %v1539 = vadd.f32 %v1537, %v1538
      %v1540 = vsel %vm1401, %v1337, 0.0
      %v1541 = vsel %vm1401, %v1338, 0.0
      %v1542 = vadd.f32 %v1540, %v1541
      %v1543 = vsel %vm1401, %v1339, 0.0
      %v1544 = vadd.f32 %v1542, %v1543
      %v1545 = vsel %vm1401, %v1340, 0.0
      %v1546 = vadd.f32 %v1544, %v1545
      %v1547 = vsel %vm1401, %v1341, 0.0
      %v1548 = vadd.f32 %v1546, %v1547
      %v1549 = vsel %vm1401, %v1342, 0.0
      %v1550 = vadd.f32 %v1548, %v1549
      %v1551 = vsel %vm1401, %v1343, 0.0
      %v1552 = vadd.f32 %v1550, %v1551
      %v1553 = vsel %vm1401, %v1344, 0.0
      %v1554 = vadd.f32 %v1552, %v1553
      %v1555 = vsel %vm1401, %v1345, 0.0
      %v1556 = vadd.f32 %v1554, %v1555
      %v1557 = vsel %vm1401, %v1346, 0.0
      %v1558 = vadd.f32 %v1556, %v1557
      %v1559 = vsel %vm1401, %v1347, 0.0
      %v1560 = vadd.f32 %v1558, %v1559
      %v1561 = vsel %vm1401, %v1348, 0.0
      %v1562 = vadd.f32 %v1560, %v1561
      %v1563 = vsel %vm1401, %v1349, 0.0
      %v1564 = vadd.f32 %v1562, %v1563
      %v1565 = vsel %vm1401, %v1350, 0.0
      %v1566 = vadd.f32 %v1564, %v1565
      %v1567 = vsel %vm1401, %v1351, 0.0
      %v1568 = vadd.f32 %v1566, %v1567
      %v1569 = vsel %vm1401, %v1352, 0.0
      %v1570 = vadd.f32 %v1568, %v1569
      %v1571 = vsel %vm1401, %v1353, 0.0
      %v1572 = vadd.f32 %v1570, %v1571
      %v1573 = vsel %vm1401, %v1354, 0.0
      %v1574 = vadd.f32 %v1572, %v1573
      %v1575 = vsel %vm1401, %v1355, 0.0
      %v1576 = vadd.f32 %v1574, %v1575
      %v1577 = vsel %vm1401, %v1356, 0.0
      %v1578 = vadd.f32 %v1576, %v1577
      %v1579 = vsel %vm1401, %v1357, 0.0
      %v1580 = vadd.f32 %v1578, %v1579
      %v1581 = vsel %vm1401, %v1358, 0.0
      %v1582 = vadd.f32 %v1580, %v1581
      %v1583 = vsel %vm1401, %v1359, 0.0
      %v1584 = vadd.f32 %v1582, %v1583
      %v1585 = vsel %vm1401, %v1360, 0.0
      %v1586 = vadd.f32 %v1584, %v1585
      %v1587 = vsel %vm1401, %v1361, 0.0
      %v1588 = vadd.f32 %v1586, %v1587
      %v1589 = vsel %vm1401, %v1362, 0.0
      %v1590 = vadd.f32 %v1588, %v1589
      %v1591 = vsel %vm1401, %v1363, 0.0
      %v1592 = vadd.f32 %v1590, %v1591
      %v1593 = vsel %vm1401, %v1364, 0.0
      %v1594 = vadd.f32 %v1592, %v1593
      %v1595 = vsel %vm1401, %v1365, 0.0
      %v1596 = vadd.f32 %v1594, %v1595
      %v1597 = vsel %vm1401, %v1366, 0.0
      %v1598 = vadd.f32 %v1596, %v1597
      %v1599 = vsel %vm1401, %v1367, 0.0
      %v1600 = vadd.f32 %v1598, %v1599
      %v1601 = vsel %vm1401, %v1368, 0.0
      %v1602 = vadd.f32 %v1600, %v1601
      %v1603 = vrot.slane %v1602, 4
      %v1604 = vadd.f32 %v1602, %v1603
      %v1605 = vrot.slane %v1604, 2
      %v1606 = vadd.f32 %v1604, %v1605
      %v1607 = vrot.slane %v1606, 1
      %v1608 = vadd.f32 %v1606, %v1607
      %v1609 = vsel %vm1401, %v1369, 0.0
      %v1610 = vsel %vm1401, %v1370, 0.0
      %v1611 = vadd.f32 %v1609, %v1610
      %v1612 = vsel %vm1401, %v1371, 0.0
      %v1613 = vadd.f32 %v1611, %v1612
      %v1614 = vsel %vm1401, %v1372, 0.0
      %v1615 = vadd.f32 %v1613, %v1614
      %v1616 = vsel %vm1401, %v1373, 0.0
      %v1617 = vadd.f32 %v1615, %v1616
      %v1618 = vsel %vm1401, %v1374, 0.0
      %v1619 = vadd.f32 %v1617, %v1618
      %v1620 = vsel %vm1401, %v1375, 0.0
      %v1621 = vadd.f32 %v1619, %v1620
      %v1622 = vsel %vm1401, %v1376, 0.0
      %v1623 = vadd.f32 %v1621, %v1622
      %v1624 = vsel %vm1401, %v1377, 0.0
      %v1625 = vadd.f32 %v1623, %v1624
      %v1626 = vsel %vm1401, %v1378, 0.0
      %v1627 = vadd.f32 %v1625, %v1626
      %v1628 = vsel %vm1401, %v1379, 0.0
      %v1629 = vadd.f32 %v1627, %v1628
      %v1630 = vsel %vm1401, %v1380, 0.0
      %v1631 = vadd.f32 %v1629, %v1630
      %v1632 = vsel %vm1401, %v1381, 0.0
      %v1633 = vadd.f32 %v1631, %v1632
      %v1634 = vsel %vm1401, %v1382, 0.0
      %v1635 = vadd.f32 %v1633, %v1634
      %v1636 = vsel %vm1401, %v1383, 0.0
      %v1637 = vadd.f32 %v1635, %v1636
      %v1638 = vsel %vm1401, %v1384, 0.0
      %v1639 = vadd.f32 %v1637, %v1638
      %v1640 = vsel %vm1401, %v1385, 0.0
      %v1641 = vadd.f32 %v1639, %v1640
      %v1642 = vsel %vm1401, %v1386, 0.0
      %v1643 = vadd.f32 %v1641, %v1642
      %v1644 = vsel %vm1401, %v1387, 0.0
      %v1645 = vadd.f32 %v1643, %v1644
      %v1646 = vsel %vm1401, %v1388, 0.0
      %v1647 = vadd.f32 %v1645, %v1646
      %v1648 = vsel %vm1401, %v1389, 0.0
      %v1649 = vadd.f32 %v1647, %v1648
      %v1650 = vsel %vm1401, %v1390, 0.0
      %v1651 = vadd.f32 %v1649, %v1650
      %v1652 = vsel %vm1401, %v1391, 0.0
      %v1653 = vadd.f32 %v1651, %v1652
      %v1654 = vsel %vm1401, %v1392, 0.0
      %v1655 = vadd.f32 %v1653, %v1654
      %v1656 = vsel %vm1401, %v1393, 0.0
      %v1657 = vadd.f32 %v1655, %v1656
      %v1658 = vsel %vm1401, %v1394, 0.0
      %v1659 = vadd.f32 %v1657, %v1658
      %v1660 = vsel %vm1401, %v1395, 0.0
      %v1661 = vadd.f32 %v1659, %v1660
      %v1662 = vsel %vm1401, %v1396, 0.0
      %v1663 = vadd.f32 %v1661, %v1662
      %v1664 = vsel %vm1401, %v1397, 0.0
      %v1665 = vadd.f32 %v1663, %v1664
      %v1666 = vsel %vm1401, %v1398, 0.0
      %v1667 = vadd.f32 %v1665, %v1666
      %v1668 = vsel %vm1401, %v1399, 0.0
      %v1669 = vadd.f32 %v1667, %v1668
      %v1670 = vsel %vm1401, %v1400, 0.0
      %v1671 = vadd.f32 %v1669, %v1670
      %v1672 = vrot.slane %v1671, 4
      %v1673 = vadd.f32 %v1671, %v1672
      %v1674 = vrot.slane %v1673, 2
      %v1675 = vadd.f32 %v1673, %v1674
      %v1676 = vrot.slane %v1675, 1
      %v1677 = vadd.f32 %v1675, %v1676
      %v1678 = vmul.f32 %v1470, 0.00390625
      %v1679 = vmul.f32 %v1539, 0.00390625
      %v1680 = vmul.f32 %v1608, 0.00390625
      %v1681 = vmul.f32 %v1677, 0.00390625
      %v1682 = vld [vmem:[%s397] sm:$0xff]
      %v1683 = vld [vmem:[%s397 + $0x8] sm:$0xff]
      %v1684 = vld [vmem:[%s397 + $0x10] sm:$0xff]
      %v1685 = vld [vmem:[%s397 + $0x18] sm:$0xff]
      %v1686 = vld [vmem:[%s400] sm:$0x1]
      %v1688 = vlaneseq
      %v1689 = vshrl.u32 %v1688, 7
      %v1690 = vsub.s32 0, %v1689
      %v1691 = vrot.slane %v1686, %v1690
      %vm1697 = vcmask 1041409
      %v1698 = vsel %vm1697, %v1679, %v1678
      %vm1699 = vcmask 1042434
      %v1700 = vsel %vm1699, %v1680, %v1698
      %vm1701 = vcmask 1043459
      %v1702 = vsel %vm1701, %v1681, %v1700
      %v1703 = vsel %vm1401, %v1702, 0
      %1705 = vmatprep.subr.mxu0 0.0
      %1706 = vmatpush1.msra.mxu0 %v1682
      %1707 = vmatprep.subr.mxu0 0.0
      %1708 = vmatpush1.msra.mxu0 %v1683
      %1709 = vmatprep.subr.mxu0 0.0
      %1710 = vmatpush1.msra.mxu0 %v1684
      %1711 = vmatprep.subr.mxu0 0.0
      %1712 = vmatpush1.msra.mxu0 %v1685
      %1713 = vmatprep.subr.mxu0 0.0
      %1714 = vmatpush1.msra.mxu0 0.0
      %1715 = vmatprep.subr.mxu0 0.0
      %1716 = vmatpush1.msra.mxu0 0.0
      %1717 = vmatprep.subr.mxu0 0.0
      %1718 = vmatpush1.msra.mxu0 0.0
      %1719 = vmatprep.subr.mxu0 0.0
      %1720 = vmatpush1.msra.mxu0 0.0
      %1721 = vmatprep.subr.mxu0 0.0
      %1722 = vmatpush1.msra.mxu0 0.0
      %1723 = vmatprep.subr.mxu0 0.0
      %1724 = vmatpush1.msra.mxu0 0.0
      %1725 = vmatprep.subr.mxu0 0.0
      %1726 = vmatpush1.msra.mxu0 0.0
      %1727 = vmatprep.subr.mxu0 0.0
      %1728 = vmatpush1.msra.mxu0 0.0
      %1729 = vmatprep.subr.mxu0 0.0
      %1730 = vmatpush1.msra.mxu0 0.0
      %1731 = vmatprep.subr.mxu0 0.0
      %1732 = vmatpush1.msra.mxu0 0.0
      %1733 = vmatprep.subr.mxu0 0.0
      %1734 = vmatpush1.msra.mxu0 0.0
      %1735 = vmatprep.subr.mxu0 0.0
      %1736 = vmatpush1.msra.mxu0 0.0
      %1737 = vmatprep.subr.mxu0 0.0
      %1738 = vmatpush1.msra.mxu0 0.0
      %1739 = vmatprep.subr.mxu0 0.0
      %1740 = vmatpush1.msra.mxu0 0.0
      %1741 = vmatprep.subr.mxu0 0.0
      %1742 = vmatpush1.msra.mxu0 0.0
      %1743 = vmatprep.subr.mxu0 0.0
      %1744 = vmatpush1.msra.mxu0 0.0
      %1745 = vmatprep.subr.mxu0 0.0
      %1746 = vmatpush1.msra.mxu0 0.0
      %1747 = vmatprep.subr.mxu0 0.0
      %1748 = vmatpush1.msra.mxu0 0.0
      %1749 = vmatprep.subr.mxu0 0.0
      %1750 = vmatpush1.msra.mxu0 0.0
      %1751 = vmatprep.subr.mxu0 0.0
      %1752 = vmatpush1.msra.mxu0 0.0
      %1753 = vmatprep.subr.mxu0 0.0
      %1754 = vmatpush1.msra.mxu0 0.0
      %1755 = vmatprep.subr.mxu0 0.0
      %1756 = vmatpush1.msra.mxu0 0.0
      %1757 = vmatprep.subr.mxu0 0.0
      %1758 = vmatpush1.msra.mxu0 0.0
      %1759 = vmatprep.subr.mxu0 0.0
      %1760 = vmatpush1.msra.mxu0 0.0
      %1761 = vmatprep.subr.mxu0 0.0
      %1762 = vmatpush1.msra.mxu0 0.0
      %1763 = vmatprep.subr.mxu0 0.0
      %1764 = vmatpush1.msra.mxu0 0.0
      %1765 = vmatprep.subr.mxu0 0.0
      %1766 = vmatpush1.msra.mxu0 0.0
      %1767 = vmatprep.subr.mxu0 0.0
      %1768 = vmatpush1.msra.mxu0 0.0
      %1769 = vmatprep.mubr.f32.mxu0 0.0
      %1770 = vmatmul.mubr.f32.gmra.mrb[0].mxu0 %v1703
      %v1771 = vpop.f32.mrb[0].mxu0
      %v1772 = vadd.f32 %v1691, %v1771
      %v1773 = vpop.f32.mrb[0].mxu0
      %1774 = vdwg.mxu0
      %vm1775 = vcmask 60416
      %1776 = vst.msk [vmem:[%s412] sm:$0xf] %vm1775, %v1772
      %v1777 = vld [vmem:[%s405] sm:$0xff]
      %v1778 = vld [vmem:[%s405 + $0x8] sm:$0xff]
      %v1779 = vld [vmem:[%s405 + $0x10] sm:$0xff]
      %v1780 = vld [vmem:[%s405 + $0x18] sm:$0xff]
      %v1781 = vld [vmem:[%s408] sm:$0x1]
      %v1783 = vlaneseq
      %v1784 = vshrl.u32 %v1783, 7
      %v1785 = vsub.s32 0, %v1784
      %v1786 = vrot.slane %v1781, %v1785
      %1788 = vmatprep.subr.mxu0 0.0
      %1789 = vmatpush1.msra.mxu0 %v1777
      %1790 = vmatprep.subr.mxu0 0.0
      %1791 = vmatpush1.msra.mxu0 %v1778
      %1792 = vmatprep.subr.mxu0 0.0
      %1793 = vmatpush1.msra.mxu0 %v1779
      %1794 = vmatprep.subr.mxu0 0.0
      %1795 = vmatpush1.msra.mxu0 %v1780
      %1796 = vmatprep.subr.mxu0 0.0
      %1797 = vmatpush1.msra.mxu0 0.0
      %1798 = vmatprep.subr.mxu0 0.0
      %1799 = vmatpush1.msra.mxu0 0.0
      %1800 = vmatprep.subr.mxu0 0.0
      %1801 = vmatpush1.msra.mxu0 0.0
      %1802 = vmatprep.subr.mxu0 0.0
      %1803 = vmatpush1.msra.mxu0 0.0
      %1804 = vmatprep.subr.mxu0 0.0
      %1805 = vmatpush1.msra.mxu0 0.0
      %1806 = vmatprep.subr.mxu0 0.0
      %1807 = vmatpush1.msra.mxu0 0.0
      %1808 = vmatprep.subr.mxu0 0.0
      %1809 = vmatpush1.msra.mxu0 0.0
      %1810 = vmatprep.subr.mxu0 0.0
      %1811 = vmatpush1.msra.mxu0 0.0
      %1812 = vmatprep.subr.mxu0 0.0
      %1813 = vmatpush1.msra.mxu0 0.0
      %1814 = vmatprep.subr.mxu0 0.0
      %1815 = vmatpush1.msra.mxu0 0.0
      %1816 = vmatprep.subr.mxu0 0.0
      %1817 = vmatpush1.msra.mxu0 0.0
      %1818 = vmatprep.subr.mxu0 0.0
      %1819 = vmatpush1.msra.mxu0 0.0
      %1820 = vmatprep.subr.mxu0 0.0
      %1821 = vmatpush1.msra.mxu0 0.0
      %1822 = vmatprep.subr.mxu0 0.0
      %1823 = vmatpush1.msra.mxu0 0.0
      %1824 = vmatprep.subr.mxu0 0.0
      %1825 = vmatpush1.msra.mxu0 0.0
      %1826 = vmatprep.subr.mxu0 0.0
      %1827 = vmatpush1.msra.mxu0 0.0
      %1828 = vmatprep.subr.mxu0 0.0
      %1829 = vmatpush1.msra.mxu0 0.0
      %1830 = vmatprep.subr.mxu0 0.0
      %1831 = vmatpush1.msra.mxu0 0.0
      %1832 = vmatprep.subr.mxu0 0.0
      %1833 = vmatpush1.msra.mxu0 0.0
      %1834 = vmatprep.subr.mxu0 0.0
      %1835 = vmatpush1.msra.mxu0 0.0
      %1836 = vmatprep.subr.mxu0 0.0
      %1837 = vmatpush1.msra.mxu0 0.0
      %1838 = vmatprep.subr.mxu0 0.0
      %1839 = vmatpush1.msra.mxu0 0.0
      %1840 = vmatprep.subr.mxu0 0.0
      %1841 = vmatpush1.msra.mxu0 0.0
      %1842 = vmatprep.subr.mxu0 0.0
      %1843 = vmatpush1.msra.mxu0 0.0
      %1844 = vmatprep.subr.mxu0 0.0
      %1845 = vmatpush1.msra.mxu0 0.0
      %1846 = vmatprep.subr.mxu0 0.0
      %1847 = vmatpush1.msra.mxu0 0.0
      %1848 = vmatprep.subr.mxu0 0.0
      %1849 = vmatpush1.msra.mxu0 0.0
      %1850 = vmatprep.subr.mxu0 0.0
      %1851 = vmatpush1.msra.mxu0 0.0
      %1852 = vmatprep.mubr.f32.mxu0 0.0
      %1853 = vmatmul.mubr.f32.gmra.mrb[0].mxu0 %v1703
      %v1854 = vpop.f32.mrb[0].mxu0
      %v1855 = vadd.f32 %v1786, %v1854
      %v1856 = vpop.f32.mrb[0].mxu0
      %1857 = vdwg.mxu0
      %v1858 = vmul.f32 %v1855, %v1855
      %vm1859 = vcmask 125952
      %v1860 = vsel %vm1859, %v1858, 0.0
      %1861 = vadd.xlane.f32.xlu0 %v1860
      %v1862 = vpop.xlane.xlu0 %1861
      %v1863 = vmax.f32 %v1862, 1e-24
      %v1864 = vrsqrt.pop %v1863
      %v1865 = vmul.f32 %v1855, %v1864
      %1866 = vst.msk [vmem:[%s416] sm:$0xf] %vm1859, %v1865
      %p1867 = scmp.lt.s32.totalorder %s20, 1
      %s1868 = scalar_select %p1867, %s20, 1
      %s1869 = smul.addr %s1868, 4
      %s1870 = scalar_lea.vmem %s7, %s1869
      %p1871 = scmp.lt.s32.totalorder %s20, 1
      %s1872 = scalar_select %p1871, %s20, 1
      %s1873 = smul.addr %s1872, 4
      %s1874 = scalar_lea.vmem %s8, %s1873
      // Predicated region
      $region49: #{pico_forward.4} parent=47 // pred_check
        %p1875 = pneg %p220
      $region50: #{pico_forward.4} parent=47 // pred_check_branch
        %1877 = sbr.rel (%p1875) target = $region52
      $region51: #{pico_forward.4} parent=47 // pred_region
        _
      $region52: #{pico_forward.4} parent=47 // pred_fallthru
        _
      // Predicated region
      $region53: #{pico_forward.4} parent=47 // pred_check
        %p1878 = pneg %p246
      $region54: #{pico_forward.4} parent=47 // pred_check_branch
        %1880 = sbr.rel (%p1878) target = $region56
      $region55: #{pico_forward.4} parent=47 // pred_region
        _
      $region56: #{pico_forward.4} parent=47 // pred_fallthru
        _
    $region48: #{pico_forward.4} parent=5 // pred_fallthru
      _
    %p1881 = scmp.le.s32.totalorder 2, %s15
    // Predicated region
    $region57: #{pico_forward.4} parent=5 // pred_check
      %p1882 = pneg %p1881
    $region58: #{pico_forward.4} parent=5 // pred_check_branch
      %1884 = sbr.rel (%p1882) target = $region60
    $region59: #{pico_forward.4} parent=5 // pred_region
      %s1885 = ssub.s32 %s15, 2
      // Predicated region
      $region61: #{pico_forward.4} parent=59 // pred_check
        %p1886 = pneg %p226
      $region62: #{pico_forward.4} parent=59 // pred_check_branch
        %1888 = sbr.rel (%p1886) target = $region64
      $region63: #{pico_forward.4} parent=59 // pred_region
        %p1889 = scmp.lt.s32.totalorder %s21, 1
        %s1890 = scalar_select %p1889, %s21, 1
        %s1891 = smul.addr %s1890, 4
        %s1892 = scalar_lea.vmem %s7, %s1891
      $region64: #{pico_forward.4} parent=59 // pred_fallthru
        _
      // Predicated region
      $region65: #{pico_forward.4} parent=59 // pred_check
        %p1893 = pneg %p252
      $region66: #{pico_forward.4} parent=59 // pred_check_branch
        %1895 = sbr.rel (%p1893) target = $region68
      $region67: #{pico_forward.4} parent=59 // pred_region
        %p1896 = scmp.lt.s32.totalorder %s21, 1
        %s1897 = scalar_select %p1896, %s21, 1
        %s1898 = smul.addr %s1897, 4
        %s1899 = scalar_lea.vmem %s8, %s1898
      $region68: #{pico_forward.4} parent=59 // pred_fallthru
        _
    $region60: #{pico_forward.4} parent=5 // pred_fallthru
      _
  $region6: #{pico_forward.4} parent=0 // loop_footer
    %s19 = sadd.s32 1, %s15
  $region7: #{pico_forward.4} parent=0 // loop_footer_branch
    %14 = sbr.rel target = $region3
  $region8: #{pico_forward.4} parent=0 // loop_exit
    _

</llo_original>
